<compile_context>
chip_gen: v5e
topology: v5e:2x2
jax: 0.10.0
libtpu: 0.0.40
codegen_flags: <defaults>
</compile_context>

<pallas_src>
import functools

import jax
import jax.numpy as jnp
from jax.experimental import pallas as pl
from jax.experimental.pallas import tpu as pltpu

OUT_SIZE = 256  # F.interpolate(img, 256, ...)


def _bilinear_matrix(in_size: int, out_size: int) -> jnp.ndarray:
    """Interpolation matrix W (out_size, in_size) for align_corners=True bilinear."""
    if in_size == 1:
        return jnp.ones((out_size, 1), dtype=jnp.float32)
    scale = (in_size - 1) / (out_size - 1)
    src = jnp.arange(out_size, dtype=jnp.float32) * scale          # (out,)
    lo = jnp.clip(jnp.floor(src), 0, in_size - 1)
    hi = jnp.clip(lo + 1.0, 0, in_size - 1)
    frac = src - lo
    lo_oh = jax.nn.one_hot(lo.astype(jnp.int32), in_size, dtype=jnp.float32)
    hi_oh = jax.nn.one_hot(hi.astype(jnp.int32), in_size, dtype=jnp.float32)
    return lo_oh * (1.0 - frac)[:, None] + hi_oh * frac[:, None]   # (out, in)


def _resize_kernel(x_ref, wxt_ref, wy_ref, o_ref):
    # x_ref  : (BC_TILE, H, W)   batch of (b, c) slabs
    # wxt_ref: (W, OUT)          column interpolation matrix, transposed
    # wy_ref : (OUT, H)          row interpolation matrix
    # o_ref  : (BC_TILE, OUT, OUT)
    bc, h, w = x_ref.shape
    out = o_ref.shape[-1]
    wxt = wxt_ref[...]
    wy = wy_ref[...]

    if h % 8 == 0:
        # Stage 1 fused across the whole block: one big-M MXU matmul with a
        # lane-dense (BC_TILE*H, 256) result.  (Reshape only merges/splits
        # sublane-aligned major dims -> layout preserving.)
        tmp = jnp.dot(x_ref[...].reshape(bc * h, w), wxt,
                      preferred_element_type=jnp.float32).reshape(bc, h, out)
    else:
        tmp = None  # fall back to per-slab stage 1 below

    # Stage 2 per slab (BC_TILE is small & static -> unrolled); the 256-wide
    # output dim stays in lanes for both matmuls, and no transpose is needed.
    for b in range(bc):
        t_b = (tmp[b] if tmp is not None
               else jnp.dot(x_ref[b], wxt, preferred_element_type=jnp.float32))
        o_ref[b] = jnp.dot(wy, t_b,
                           preferred_element_type=jnp.float32).astype(o_ref.dtype)


def _choose_bc_tile(bc_total: int) -> int:
    # Batch slabs to amortize the ~0.35 us per-grid-step overhead, while:
    #  * keeping the double-buffered (BC_TILE, 256, 256) f32 output block small
    #    (BC_TILE=8 -> 4 MiB of output buffers: safe even on v5e's 16 MiB
    #    default scoped VMEM, trivially so on v6e / v7x),
    #  * keeping >= 2 grid steps when possible so v7x's 2 TensorCores both work.
    max_tile = 8
    tile = min(max_tile, bc_total)
    if bc_total >= 2:
        tile = min(tile, pl.cdiv(bc_total, 2))
    return max(tile, 1)


@functools.partial(jax.jit, static_argnames=("out_dtype",))
def stylization_forward(img, idx=None, alpha=None, out_dtype=jnp.float32):
    """Equivalent of Stylization.forward(img, idx, alpha).

    img: float32 NCHW tensor (B, C, H, W).
    idx / alpha are accepted for signature parity but unused (see TODO above).
    Returns (B, C, 256, 256) in `out_dtype` (use bf16 to halve the dominant
    HBM writeback if the downstream network accepts it).
    """
    del idx, alpha
    B, C, H, W = img.shape
    bc_total = B * C
    x = img.reshape(bc_total, H, W).astype(jnp.float32)

    bc_tile = _choose_bc_tile(bc_total)
    num_tiles = pl.cdiv(bc_total, bc_tile)
    bc_pad = num_tiles * bc_tile
    if bc_pad != bc_total:
        x = jnp.pad(x, ((0, bc_pad - bc_total), (0, 0), (0, 0)))

    wy = _bilinear_matrix(H, OUT_SIZE)          # (256, H)
    wxt = _bilinear_matrix(W, OUT_SIZE).T       # (W, 256)

    out = pl.pallas_call(
        _resize_kernel,
        out_shape=jax.ShapeDtypeStruct((bc_pad, OUT_SIZE, OUT_SIZE), out_dtype),
        grid_spec=pltpu.PrefetchScalarGridSpec(
            num_scalar_prefetch=0,
            grid=(num_tiles,),
            in_specs=[
                pl.BlockSpec((bc_tile, H, W), lambda i: (i, 0, 0)),
                pl.BlockSpec((W, OUT_SIZE), lambda i: (0, 0)),
                pl.BlockSpec((OUT_SIZE, H), lambda i: (0, 0)),
            ],
            out_specs=pl.BlockSpec((bc_tile, OUT_SIZE, OUT_SIZE),
                                   lambda i: (i, 0, 0)),
        ),
        compiler_params=pltpu.CompilerParams(
            dimension_semantics=("parallel",)),
    )(x, wxt, wy)

    return out[:bc_total].reshape(B, C, OUT_SIZE, OUT_SIZE)


if __name__ == "__main__":
    key = jax.random.PRNGKey(0)
    B, C, H, W = 2, 4, 16, 16
    img = jax.random.normal(key, (B, C, H, W), dtype=jnp.float32)

    out = stylization_forward(img, idx=0, alpha=jnp.array([0.5], jnp.float32))
    out = jax.block_until_ready(out)

    # Pure-JAX reference of the same bilinear (align_corners=True) resize.
    wy = _bilinear_matrix(H, OUT_SIZE)
    wxt = _bilinear_matrix(W, OUT_SIZE).T
    ref = jnp.einsum("oh,bchw,wp->bcop", wy, img.astype(jnp.float32), wxt)
    assert out.shape == (B, C, OUT_SIZE, OUT_SIZE)
    assert jnp.allclose(out, ref, atol=1e-4, rtol=1e-4)

    print("KERNEL_OK")
</pallas_src>

<mosaic_0001>
module attributes {stable_mosaic.version = 11 : i64} {
  func.func @_resize_kernel(%arg0: i32, %arg1: memref<4x16x16xf32, #tpu.memory_space<vmem>>, %arg2: memref<16x256xf32, #tpu.memory_space<vmem>>, %arg3: memref<256x16xf32, #tpu.memory_space<vmem>>, %arg4: memref<4x256x256xf32, #tpu.memory_space<vmem>>) attributes {dimension_semantics = [#tpu.dimension_semantics<parallel>], iteration_bounds = array<i64: 2>, scalar_prefetch = 0 : i64, scratch_operands = 0 : i64, tpu.core_type = #tpu.core_type<tc>, window_params = [{transform_indices = @transform_0, window_bounds = array<i64: 4, 16, 16>}, {pipeline_mode = #tpu.pipeline_mode<synchronous>, transform_indices = @transform_1, window_bounds = array<i64: 16, 256>}, {pipeline_mode = #tpu.pipeline_mode<synchronous>, transform_indices = @transform_2, window_bounds = array<i64: 256, 16>}, {transform_indices = @transform_3, window_bounds = array<i64: 4, 256, 256>}]} {
    %c0 = arith.constant 0 : index
    %c0_0 = arith.constant 0 : index
    %0 = vector.load %arg2[%c0, %c0_0] : memref<16x256xf32, #tpu.memory_space<vmem>>, vector<16x256xf32>
    %c0_1 = arith.constant 0 : index
    %c0_2 = arith.constant 0 : index
    %1 = vector.load %arg3[%c0_1, %c0_2] : memref<256x16xf32, #tpu.memory_space<vmem>>, vector<256x16xf32>
    %c0_3 = arith.constant 0 : index
    %c0_4 = arith.constant 0 : index
    %c0_5 = arith.constant 0 : index
    %2 = vector.load %arg1[%c0_3, %c0_4, %c0_5] : memref<4x16x16xf32, #tpu.memory_space<vmem>>, vector<4x16x16xf32>
    %3 = vector.shape_cast %2 : vector<4x16x16xf32> to vector<64x16xf32>
    %cst = arith.constant dense<0.000000e+00> : vector<64x256xf32>
    %4 = tpu.matmul %3, %0, %cst {dimension_numbers = #tpu.dot_dimension_numbers<[1], [0], [0], [1], [0, 0, 1, 1], [], []>} : vector<64x16xf32>, vector<16x256xf32>, vector<64x256xf32> -> vector<64x256xf32>
    %5 = vector.shape_cast %4 : vector<64x256xf32> to vector<4x16x256xf32>
    %6 = vector.extract_strided_slice %5 {offsets = [0, 0, 0], sizes = [1, 16, 256], strides = [1, 1, 1]} : vector<4x16x256xf32> to vector<1x16x256xf32>
    %7 = vector.shape_cast %6 : vector<1x16x256xf32> to vector<16x256xf32>
    %cst_6 = arith.constant dense<0.000000e+00> : vector<256x256xf32>
    %8 = tpu.matmul %1, %7, %cst_6 {dimension_numbers = #tpu.dot_dimension_numbers<[1], [0], [0], [1], [0, 0, 1, 1], [], []>} : vector<256x16xf32>, vector<16x256xf32>, vector<256x256xf32> -> vector<256x256xf32>
    %c0_7 = arith.constant 0 : index
    %c0_8 = arith.constant 0 : index
    %c0_9 = arith.constant 0 : index
    %9 = vector.load %arg4[%c0_7, %c0_8, %c0_9] : memref<4x256x256xf32, #tpu.memory_space<vmem>>, vector<1x256x256xf32>
    %10 = vector.shape_cast %9 : vector<1x256x256xf32> to vector<256x256xf32>
    %11 = vector.shape_cast %8 : vector<256x256xf32> to vector<1x256x256xf32>
    tpu.vector_store %arg4[%c0_7, %c0_8, %c0_9], %11 {strides = array<i32>} : memref<4x256x256xf32, #tpu.memory_space<vmem>>, vector<1x256x256xf32>,
    %12 = vector.extract_strided_slice %5 {offsets = [1, 0, 0], sizes = [1, 16, 256], strides = [1, 1, 1]} : vector<4x16x256xf32> to vector<1x16x256xf32>
    %13 = vector.shape_cast %12 : vector<1x16x256xf32> to vector<16x256xf32>
    %cst_10 = arith.constant dense<0.000000e+00> : vector<256x256xf32>
    %14 = tpu.matmul %1, %13, %cst_10 {dimension_numbers = #tpu.dot_dimension_numbers<[1], [0], [0], [1], [0, 0, 1, 1], [], []>} : vector<256x16xf32>, vector<16x256xf32>, vector<256x256xf32> -> vector<256x256xf32>
    %c1 = arith.constant 1 : index
    %c0_11 = arith.constant 0 : index
    %c0_12 = arith.constant 0 : index
    %15 = vector.load %arg4[%c1, %c0_11, %c0_12] : memref<4x256x256xf32, #tpu.memory_space<vmem>>, vector<1x256x256xf32>
    %16 = vector.shape_cast %15 : vector<1x256x256xf32> to vector<256x256xf32>
    %17 = vector.shape_cast %14 : vector<256x256xf32> to vector<1x256x256xf32>
    tpu.vector_store %arg4[%c1, %c0_11, %c0_12], %17 {strides = array<i32>} : memref<4x256x256xf32, #tpu.memory_space<vmem>>, vector<1x256x256xf32>,
    %18 = vector.extract_strided_slice %5 {offsets = [2, 0, 0], sizes = [1, 16, 256], strides = [1, 1, 1]} : vector<4x16x256xf32> to vector<1x16x256xf32>
    %19 = vector.shape_cast %18 : vector<1x16x256xf32> to vector<16x256xf32>
    %cst_13 = arith.constant dense<0.000000e+00> : vector<256x256xf32>
    %20 = tpu.matmul %1, %19, %cst_13 {dimension_numbers = #tpu.dot_dimension_numbers<[1], [0], [0], [1], [0, 0, 1, 1], [], []>} : vector<256x16xf32>, vector<16x256xf32>, vector<256x256xf32> -> vector<256x256xf32>
    %c2 = arith.constant 2 : index
    %c0_14 = arith.constant 0 : index
    %c0_15 = arith.constant 0 : index
    %21 = vector.load %arg4[%c2, %c0_14, %c0_15] : memref<4x256x256xf32, #tpu.memory_space<vmem>>, vector<1x256x256xf32>
    %22 = vector.shape_cast %21 : vector<1x256x256xf32> to vector<256x256xf32>
    %23 = vector.shape_cast %20 : vector<256x256xf32> to vector<1x256x256xf32>
    tpu.vector_store %arg4[%c2, %c0_14, %c0_15], %23 {strides = array<i32>} : memref<4x256x256xf32, #tpu.memory_space<vmem>>, vector<1x256x256xf32>,
    %24 = vector.extract_strided_slice %5 {offsets = [3, 0, 0], sizes = [1, 16, 256], strides = [1, 1, 1]} : vector<4x16x256xf32> to vector<1x16x256xf32>
    %25 = vector.shape_cast %24 : vector<1x16x256xf32> to vector<16x256xf32>
    %cst_16 = arith.constant dense<0.000000e+00> : vector<256x256xf32>
    %26 = tpu.matmul %1, %25, %cst_16 {dimension_numbers = #tpu.dot_dimension_numbers<[1], [0], [0], [1], [0, 0, 1, 1], [], []>} : vector<256x16xf32>, vector<16x256xf32>, vector<256x256xf32> -> vector<256x256xf32>
    %c3 = arith.constant 3 : index
    %c0_17 = arith.constant 0 : index
    %c0_18 = arith.constant 0 : index
    %27 = vector.load %arg4[%c3, %c0_17, %c0_18] : memref<4x256x256xf32, #tpu.memory_space<vmem>>, vector<1x256x256xf32>
    %28 = vector.shape_cast %27 : vector<1x256x256xf32> to vector<256x256xf32>
    %29 = vector.shape_cast %26 : vector<256x256xf32> to vector<1x256x256xf32>
    tpu.vector_store %arg4[%c3, %c0_17, %c0_18], %29 {strides = array<i32>} : memref<4x256x256xf32, #tpu.memory_space<vmem>>, vector<1x256x256xf32>,
    return
  }
  func.func @transform_0(%arg0: i32) -> (i32, i32, i32) {
    %c0_i32 = arith.constant 0 : i32
    %c0_i32_0 = arith.constant 0 : i32
    %c0_i32_1 = arith.constant 0 : i32
    return %arg0, %c0_i32, %c0_i32_0 : i32, i32, i32
  }
  func.func @transform_1(%arg0: i32) -> (i32, i32) {
    %c0_i32 = arith.constant 0 : i32
    %c0_i32_0 = arith.constant 0 : i32
    %c0_i32_1 = arith.constant 0 : i32
    return %c0_i32, %c0_i32_0 : i32, i32
  }
  func.func @transform_2(%arg0: i32) -> (i32, i32) {
    %c0_i32 = arith.constant 0 : i32
    %c0_i32_0 = arith.constant 0 : i32
    %c0_i32_1 = arith.constant 0 : i32
    return %c0_i32, %c0_i32_0 : i32, i32
  }
  func.func @transform_3(%arg0: i32) -> (i32, i32, i32) {
    %c0_i32 = arith.constant 0 : i32
    %c0_i32_0 = arith.constant 0 : i32
    %c0_i32_1 = arith.constant 0 : i32
    return %arg0, %c0_i32, %c0_i32_0 : i32, i32, i32
  }
}

</mosaic_0001>

<llo_original>
// kernel: stylization_forward.1
$region0: #{stylization_forward.1}
  #allocation0 [shape = 'u32[]', space=smem, size = 0x4, offset = 0x4, fixed_abs, tag = 'smem constant byte address 0x4 - core index']
  #allocation1 [shape = 'u32[72,128]{1,0:T(1,128)}', space=vmem, size = 0x9000, scoped, tag = 'internal scratch']
  %s0 = inlined_call_operand.hbm [shape: f32[8,16,16], index: 0, kind: input, shape index: {}]
  %s1 = inlined_call_operand.vmem [shape: f32[16,256], index: 1, kind: input, shape index: {}]
  %s2 = inlined_call_operand.vmem [shape: f32[256,16], index: 2, kind: input, shape index: {}]
  %s3 = inlined_call_operand.hbm [shape: f32[8,256,256], index: 3, kind: output, shape index: {}]
  %s4 = sld [smem:[#allocation0]]
  $region49: #{stylization_forward.1} parent=0
    _
  %s6 = ssub.s32 1, %s4
  %s7 = scalar_select 0, %s6, %s4
  $region1: #{stylization_forward.1} parent=0
    #allocation2 [shape = 'u8[65536]{0}', space=vmem, size = 0x10000, scoped, tag = 'input window, operand 0']
    #allocation3 [shape = 's32[2]{0}', space=sflag, size = 0x8, scoped, tag = 'scoped memory for stylization_forward.1']
    #allocation4 [shape = 's32[2]{0}', space=sflag, size = 0x8, scoped, tag = 'scoped memory for stylization_forward.1']
    #allocation5 [shape = 'u8[2097152]{0}', space=vmem, size = 0x200000, scoped, tag = 'output window, operand 0']
    %8 = vsyncpa [#allocation3], 0
    %s9 = scalar_lea.sflag [#allocation3], 1
    %10 = vsyncpa %s9, 0
    %11 = vsyncpa [#allocation4], 0
    %s12 = scalar_lea.sflag [#allocation4], 1
    %13 = vsyncpa %s12, 0
    loop: start=0, step=1, limit=4
    $region2: #{stylization_forward.1} parent=1 // loop_pre_header
      _
    $region3: #{stylization_forward.1} parent=1 // loop_header
      %s15 = sphi 0, %s19
      %p16 = scmp.ge.s32.totalorder %s15, 4
      %s25 = sphi 0, %s27
      %s28 = sphi 0, %s25
      %s29 = sphi 0, %s28
      %s45 = sphi 0, %s29
      %s49 = sphi 0, %s49
      %s51 = sphi 0, %s49
      %s52 = sphi 0, %s51
      %s66 = sphi 0, %s52
      %s70 = sphi 0, %s70
      %s72 = sphi 0, %s70
      %s73 = sphi 0, %s72
      %s87 = sphi 0, %s73
      %s93 = sphi 0, %s95
      %s96 = sphi 0, %s93
      %s97 = sphi 0, %s96
      %s113 = sphi 0, %s97
    $region4: #{stylization_forward.1} parent=1 // loop_header_branch
      %18 = sbr.rel (%p16) target = $region8
    $region5: #{stylization_forward.1} parent=1 // loop_body
      %s20 = ssub.s32 %s15, 1
      %s21 = ssub.s32 %s15, 2
      %s22 = sadd.s32 %s15, 1
      %s23 = ssub.s32 %s15, %s22
      %p24 = scmp.eq.s32.totalorder %s23, 0
      %s26 = sadd.s32 %s25, 1
      %s27 = scalar_select %p24, %s25, %s26
      %p30 = pneg %p24
      %p31 = scmp.eq.s32.totalorder %s15, 1
      %p32 = por %p30, %p31
      %p33 = scmp.ne.s32.totalorder %s25, %s28
      %p34 = scmp.eq.s32.totalorder %s15, 0
      %p35 = por %p33, %p34
      %p36 = scmp.ne.s32.totalorder %s25, %s28
      %p37 = scmp.eq.s32.totalorder %s20, 1
      %p38 = por %p36, %p37
      %p39 = scmp.ne.s32.totalorder %s28, %s29
      %p40 = scmp.eq.s32.totalorder %s20, 0
      %p41 = por %p39, %p40
      %p42 = scmp.ne.s32.totalorder %s28, %s29
      %p43 = scmp.eq.s32.totalorder %s21, 1
      %p44 = por %p42, %p43
      %p46 = scmp.ne.s32.totalorder %s29, %s45
      %p47 = scmp.eq.s32.totalorder %s21, 0
      %p48 = por %p46, %p47
      %s50 = sadd.s32 %s49, 1
      %p53 = scmp.eq.s32.totalorder %s15, 1
      %p54 = scmp.ne.s32.totalorder %s49, %s51
      %p55 = scmp.eq.s32.totalorder %s15, 0
      %p56 = por %p54, %p55
      %p57 = scmp.ne.s32.totalorder %s49, %s51
      %p58 = scmp.eq.s32.totalorder %s20, 1
      %p59 = por %p57, %p58
      %p60 = scmp.ne.s32.totalorder %s51, %s52
      %p61 = scmp.eq.s32.totalorder %s20, 0
      %p62 = por %p60, %p61
      %p63 = scmp.ne.s32.totalorder %s51, %s52
      %p64 = scmp.eq.s32.totalorder %s21, 1
      %p65 = por %p63, %p64
      %p67 = scmp.ne.s32.totalorder %s52, %s66
      %p68 = scmp.eq.s32.totalorder %s21, 0
      %p69 = por %p67, %p68
      %s71 = sadd.s32 %s70, 1
      %p74 = scmp.eq.s32.totalorder %s15, 1
      %p75 = scmp.ne.s32.totalorder %s70, %s72
      %p76 = scmp.eq.s32.totalorder %s15, 0
      %p77 = por %p75, %p76
      %p78 = scmp.ne.s32.totalorder %s70, %s72
      %p79 = scmp.eq.s32.totalorder %s20, 1
      %p80 = por %p78, %p79
      %p81 = scmp.ne.s32.totalorder %s72, %s73
      %p82 = scmp.eq.s32.totalorder %s20, 0
      %p83 = por %p81, %p82
      %p84 = scmp.ne.s32.totalorder %s72, %s73
      %p85 = scmp.eq.s32.totalorder %s21, 1
      %p86 = por %p84, %p85
      %p88 = scmp.ne.s32.totalorder %s73, %s87
      %p89 = scmp.eq.s32.totalorder %s21, 0
      %p90 = por %p88, %p89
      %s91 = ssub.s32 %s15, %s22
      %p92 = scmp.eq.s32.totalorder %s91, 0
      %s94 = sadd.s32 %s93, 1
      %s95 = scalar_select %p92, %s93, %s94
      %p98 = pneg %p92
      %p99 = scmp.eq.s32.totalorder %s15, 1
      %p100 = por %p98, %p99
      %p101 = scmp.ne.s32.totalorder %s93, %s96
      %p102 = scmp.eq.s32.totalorder %s15, 0
      %p103 = por %p101, %p102
      %p104 = scmp.ne.s32.totalorder %s93, %s96
      %p105 = scmp.eq.s32.totalorder %s20, 1
      %p106 = por %p104, %p105
      %p107 = scmp.ne.s32.totalorder %s96, %s97
      %p108 = scmp.eq.s32.totalorder %s20, 0
      %p109 = por %p107, %p108
      %p110 = scmp.ne.s32.totalorder %s96, %s97
      %p111 = scmp.eq.s32.totalorder %s21, 1
      %p112 = por %p110, %p111
      %p114 = scmp.ne.s32.totalorder %s97, %s113
      %p115 = scmp.eq.s32.totalorder %s21, 0
      %p116 = por %p114, %p115
      %p117 = scmp.le.s32.totalorder 1, %s15
      %p118 = scmp.lt.s32.totalorder %s15, 3
      %p119 = pnand %p117, %p118
      %p120 = pneg %p119
      // Predicated region
      $region9: #{stylization_forward.1} parent=5 // pred_check
        _
      $region10: #{stylization_forward.1} parent=5 // pred_check_branch
        %122 = sbr.rel (%p119) target = $region12
      $region11: #{stylization_forward.1} parent=5 // pred_region
        %s123 = ssub.s32 %s15, 1
        // Predicated region
        $region13: #{stylization_forward.1} parent=11 // pred_check
          %p124 = pneg %p62
        $region14: #{stylization_forward.1} parent=11 // pred_check_branch
          %126 = sbr.rel (%p124) target = $region16
        $region15: #{stylization_forward.1} parent=11 // pred_region
          _
        $region16: #{stylization_forward.1} parent=11 // pred_fallthru
          _
        // Predicated region
        $region17: #{stylization_forward.1} parent=11 // pred_check
          %p127 = pneg %p83
        $region18: #{stylization_forward.1} parent=11 // pred_check_branch
          %129 = sbr.rel (%p127) target = $region20
        $region19: #{stylization_forward.1} parent=11 // pred_region
          _
        $region20: #{stylization_forward.1} parent=11 // pred_fallthru
          _
      $region12: #{stylization_forward.1} parent=5 // pred_fallthru
        _
      %p130 = scmp.lt.s32.totalorder %s15, 2
      // Predicated region
      $region21: #{stylization_forward.1} parent=5 // pred_check
        %p131 = pneg %p130
      $region22: #{stylization_forward.1} parent=5 // pred_check_branch
        %133 = sbr.rel (%p131) target = $region24
      $region23: #{stylization_forward.1} parent=5 // pred_region
        // Predicated region
        $region25: #{stylization_forward.1} parent=23 // pred_check
          %p134 = pneg %p35
        $region26: #{stylization_forward.1} parent=23 // pred_check_branch
          %136 = sbr.rel (%p134) target = $region28
        $region27: #{stylization_forward.1} parent=23 // pred_region
          %s137 = sand.u32 %s25, 1
          %s138 = scalar_lea.sflag [#allocation3], %s137
          %s139 = sand.u32 %s25, 1
          %s140 = smul.addr %s139, 64
          %s141 = scalar_lea.vmem [#allocation2], %s140
          %s142 = smul.u32 4, %s15
          %144 = vsyncadd %s138, 0
          %s145 = smul.addr %s142, 2
          %s146 = smul.addr %s145, 8
          %s147 = scalar_lea.hbm %s0, %s146
          %s148 = sshll.u32 %s147, 4
          %s149 = int_to_ptr.hbm [resolvable:$true] %s148
          %s150 = sshll.u32 %s141, 4
          %s151 = int_to_ptr.vmem [resolvable:$true] %s150
          %156 = dma.hbm_to_vmem [thread:$0]  %s149, 1024, %s151, %s138, 128, 128, 8
        $region28: #{stylization_forward.1} parent=23 // pred_fallthru
          _
      $region24: #{stylization_forward.1} parent=5 // pred_fallthru
        _
      %p157 = scmp.le.s32.totalorder 1, %s15
      %p158 = scmp.lt.s32.totalorder %s15, 3
      %p159 = pnand %p157, %p158
      %p160 = pneg %p159
      // Predicated region
      $region29: #{stylization_forward.1} parent=5 // pred_check
        _
      $region30: #{stylization_forward.1} parent=5 // pred_check_branch
        %162 = sbr.rel (%p159) target = $region32
      $region31: #{stylization_forward.1} parent=5 // pred_region
        %s163 = ssub.s32 %s15, 1
        %s164 = sand.u32 %s28, 1
        %s165 = scalar_lea.sflag [#allocation3], %s164
        %s166 = sand.u32 %s28, 1
        %s167 = smul.addr %s166, 64
        %s168 = scalar_lea.vmem [#allocation2], %s167
        // Predicated region
        $region33: #{stylization_forward.1} parent=31 // pred_check
          %p169 = pneg %p41
        $region34: #{stylization_forward.1} parent=31 // pred_check_branch
          %171 = sbr.rel (%p169) target = $region36
        $region35: #{stylization_forward.1} parent=31 // pred_region
          %173 = dma.done %s165, 1024
        $region36: #{stylization_forward.1} parent=31 // pred_fallthru
          _
        %s174 = sand.u32 %s28, 1
        %s175 = scalar_lea.sflag [#allocation3], %s174
        %s176 = sand.u32 %s28, 1
        %s177 = smul.addr %s176, 64
        %s178 = scalar_lea.vmem [#allocation2], %s177
        %p179 = pneg %p41
        %p180 = pneg %p38
        %p181 = pneg %p62
        %p182 = pneg %p59
        %p183 = pneg %p83
        %p184 = pneg %p80
        %p185 = pneg %p109
        %p186 = pneg %p106
        %s187 = sand.u32 %s96, 1
        %s188 = scalar_lea.sflag [#allocation4], %s187
        %s189 = sand.u32 %s96, 1
        %s190 = smul.addr %s189, 2048
        %s191 = scalar_lea.vmem [#allocation5], %s190
        %s192 = smul.u32 4, %s20
        %s193 = smul.u32 4, %s20
        %v194 = vld [vmem:[%s1] sm:$0xff]
        %v195 = vld [vmem:[%s1 + $0x8] sm:$0xff]
        %v196 = vld [vmem:[%s1 + $0x10] sm:$0xff]
        %v197 = vld [vmem:[%s1 + $0x18] sm:$0xff]
        %v198 = vld [vmem:[%s2] sm:$0xff]
        %v199 = vld [vmem:[%s2 + $0x8] sm:$0xff]
        %v200 = vld [vmem:[%s2 + $0x10] sm:$0xff]
        %v201 = vld [vmem:[%s2 + $0x18] sm:$0xff]
        %v202 = vld [vmem:[%s2 + $0x20] sm:$0xff]
        %v203 = vld [vmem:[%s2 + $0x28] sm:$0xff]
        %v204 = vld [vmem:[%s2 + $0x30] sm:$0xff]
        %v205 = vld [vmem:[%s2 + $0x38] sm:$0xff]
        %v206 = vld [vmem:[%s2 + $0x40] sm:$0xff]
        %v207 = vld [vmem:[%s2 + $0x48] sm:$0xff]
        %v208 = vld [vmem:[%s2 + $0x50] sm:$0xff]
        %v209 = vld [vmem:[%s2 + $0x58] sm:$0xff]
        %v210 = vld [vmem:[%s2 + $0x60] sm:$0xff]
        %v211 = vld [vmem:[%s2 + $0x68] sm:$0xff]
        %v212 = vld [vmem:[%s2 + $0x70] sm:$0xff]
        %v213 = vld [vmem:[%s2 + $0x78] sm:$0xff]
        %v214 = vld [vmem:[%s2 + $0x80] sm:$0xff]
        %v215 = vld [vmem:[%s2 + $0x88] sm:$0xff]
        %v216 = vld [vmem:[%s2 + $0x90] sm:$0xff]
        %v217 = vld [vmem:[%s2 + $0x98] sm:$0xff]
        %v218 = vld [vmem:[%s2 + $0xa0] sm:$0xff]
        %v219 = vld [vmem:[%s2 + $0xa8] sm:$0xff]
        %v220 = vld [vmem:[%s2 + $0xb0] sm:$0xff]
        %v221 = vld [vmem:[%s2 + $0xb8] sm:$0xff]
        %v222 = vld [vmem:[%s2 + $0xc0] sm:$0xff]
        %v223 = vld [vmem:[%s2 + $0xc8] sm:$0xff]
        %v224 = vld [vmem:[%s2 + $0xd0] sm:$0xff]
        %v225 = vld [vmem:[%s2 + $0xd8] sm:$0xff]
        %v226 = vld [vmem:[%s2 + $0xe0] sm:$0xff]
        %v227 = vld [vmem:[%s2 + $0xe8] sm:$0xff]
        %v228 = vld [vmem:[%s2 + $0xf0] sm:$0xff]
        %v229 = vld [vmem:[%s2 + $0xf8] sm:$0xff]
        %v230 = vld [vmem:[%s168] sm:$0xff]
        %v231 = vld [vmem:[%s168 + $0x8] sm:$0xff]
        %v232 = vld [vmem:[%s168 + $0x10] sm:$0xff]
        %v233 = vld [vmem:[%s168 + $0x18] sm:$0xff]
        %v234 = vld [vmem:[%s168 + $0x20] sm:$0xff]
        %v235 = vld [vmem:[%s168 + $0x28] sm:$0xff]
        %v236 = vld [vmem:[%s168 + $0x30] sm:$0xff]
        %v237 = vld [vmem:[%s168 + $0x38] sm:$0xff]
        %vm238 = vcmask 130048
        %v240 = vsel %vm238, %v230, 0
        %v243 = vsel %vm238, %v231, 0
        %v246 = vsel %vm238, %v232, 0
        %v249 = vsel %vm238, %v233, 0
        %v252 = vsel %vm238, %v234, 0
        %v255 = vsel %vm238, %v235, 0
        %v258 = vsel %vm238, %v236, 0
        %v261 = vsel %vm238, %v237, 0
        %263 = vmatpush.msra.mxu0 0.0
        %264 = vmatpush.msra.mxu0 0.0
        %265 = vmatpush.msra.mxu0 0.0
        %266 = vmatpush.msra.mxu0 0.0
        %267 = vmatpush.msra.mxu0 0.0
        %268 = vmatpush.msra.mxu0 0.0
        %269 = vmatpush.msra.mxu0 0.0
        %270 = vmatpush.msra.mxu0 0.0
        %271 = vmatpush.msra.mxu0 0.0
        %272 = vmatpush.msra.mxu0 0.0
        %273 = vmatpush.msra.mxu0 0.0
        %274 = vmatpush.msra.mxu0 0.0
        %275 = vmatpush.msra.mxu0 0.0
        %276 = vmatpush.msra.mxu0 0.0
        %277 = vmatpush.msra.mxu0 %v196
        %278 = vmatpush.msra.mxu0 %v194
        %279 = vmatmul.f32.gmra.mxu0 %v240
        %v280 = vpop.f32.mrf.mxu0
        %v281 = vadd.f32 0.0, %v280
        %282 = vmatmul.f32.gmra.mxu0 %v243
        %v283 = vpop.f32.mrf.mxu0
        %v284 = vadd.f32 0.0, %v283
        %285 = vmatmul.f32.gmra.mxu0 %v246
        %v286 = vpop.f32.mrf.mxu0
        %v287 = vadd.f32 0.0, %v286
        %288 = vmatmul.f32.gmra.mxu0 %v249
        %v289 = vpop.f32.mrf.mxu0
        %v290 = vadd.f32 0.0, %v289
        %291 = vmatmul.f32.gmra.mxu0 %v252
        %v292 = vpop.f32.mrf.mxu0
        %v293 = vadd.f32 0.0, %v292
        %294 = vmatmul.f32.gmra.mxu0 %v255
        %v295 = vpop.f32.mrf.mxu0
        %v296 = vadd.f32 0.0, %v295
        %297 = vmatmul.f32.gmra.mxu0 %v258
        %v298 = vpop.f32.mrf.mxu0
        %v299 = vadd.f32 0.0, %v298
        %300 = vmatmul.f32.gmra.mxu0 %v261
        %v301 = vpop.f32.mrf.mxu0
        %v302 = vadd.f32 0.0, %v301
        %303 = vdwg.mxu0
        %304 = vmatpush.msra.mxu0 0.0
        %305 = vmatpush.msra.mxu0 0.0
        %306 = vmatpush.msra.mxu0 0.0
        %307 = vmatpush.msra.mxu0 0.0
        %308 = vmatpush.msra.mxu0 0.0
        %309 = vmatpush.msra.mxu0 0.0
        %310 = vmatpush.msra.mxu0 0.0
        %311 = vmatpush.msra.mxu0 0.0
        %312 = vmatpush.msra.mxu0 0.0
        %313 = vmatpush.msra.mxu0 0.0
        %314 = vmatpush.msra.mxu0 0.0
        %315 = vmatpush.msra.mxu0 0.0
        %316 = vmatpush.msra.mxu0 0.0
        %317 = vmatpush.msra.mxu0 0.0
        %318 = vmatpush.msra.mxu0 %v197
        %319 = vmatpush.msra.mxu0 %v195
        %320 = vmatmul.f32.gmra.mxu0 %v240
        %v321 = vpop.f32.mrf.mxu0
        %v322 = vadd.f32 0.0, %v321
        %323 = vmatmul.f32.gmra.mxu0 %v243
        %v324 = vpop.f32.mrf.mxu0
        %v325 = vadd.f32 0.0, %v324
        %326 = vmatmul.f32.gmra.mxu0 %v246
        %v327 = vpop.f32.mrf.mxu0
        %v328 = vadd.f32 0.0, %v327
        %329 = vmatmul.f32.gmra.mxu0 %v249
        %v330 = vpop.f32.mrf.mxu0
        %v331 = vadd.f32 0.0, %v330
        %332 = vmatmul.f32.gmra.mxu0 %v252
        %v333 = vpop.f32.mrf.mxu0
        %v334 = vadd.f32 0.0, %v333
        %335 = vmatmul.f32.gmra.mxu0 %v255
        %v336 = vpop.f32.mrf.mxu0
        %v337 = vadd.f32 0.0, %v336
        %338 = vmatmul.f32.gmra.mxu0 %v258
        %v339 = vpop.f32.mrf.mxu0
        %v340 = vadd.f32 0.0, %v339
        %341 = vmatmul.f32.gmra.mxu0 %v261
        %v342 = vpop.f32.mrf.mxu0
        %v343 = vadd.f32 0.0, %v342
        %344 = vdwg.mxu0
        %v346 = vsel %vm238, %v198, 0
        %v349 = vsel %vm238, %v199, 0
        %v352 = vsel %vm238, %v200, 0
        %v355 = vsel %vm238, %v201, 0
        %v358 = vsel %vm238, %v202, 0
        %v361 = vsel %vm238, %v203, 0
        %v364 = vsel %vm238, %v204, 0
        %v367 = vsel %vm238, %v205, 0
        %v370 = vsel %vm238, %v206, 0
        %v373 = vsel %vm238, %v207, 0
        %v376 = vsel %vm238, %v208, 0
        %v379 = vsel %vm238, %v209, 0
        %v382 = vsel %vm238, %v210, 0
        %v385 = vsel %vm238, %v211, 0
        %v388 = vsel %vm238, %v212, 0
        %v391 = vsel %vm238, %v213, 0
        %v394 = vsel %vm238, %v214, 0
        %v397 = vsel %vm238, %v215, 0
        %v400 = vsel %vm238, %v216, 0
        %v403 = vsel %vm238, %v217, 0
        %v406 = vsel %vm238, %v218, 0
        %v409 = vsel %vm238, %v219, 0
        %v412 = vsel %vm238, %v220, 0
        %v415 = vsel %vm238, %v221, 0
        %v418 = vsel %vm238, %v222, 0
        %v421 = vsel %vm238, %v223, 0
        %v424 = vsel %vm238, %v224, 0
        %v427 = vsel %vm238, %v225, 0
        %v430 = vsel %vm238, %v226, 0
        %v433 = vsel %vm238, %v227, 0
        %v436 = vsel %vm238, %v228, 0
        %v439 = vsel %vm238, %v229, 0
        %441 = vmatpush.msra.mxu0 0.0
        %442 = vmatpush.msra.mxu0 0.0
        %443 = vmatpush.msra.mxu0 0.0
        %444 = vmatpush.msra.mxu0 0.0
        %445 = vmatpush.msra.mxu0 0.0
        %446 = vmatpush.msra.mxu0 0.0
        %447 = vmatpush.msra.mxu0 0.0
        %448 = vmatpush.msra.mxu0 0.0
        %449 = vmatpush.msra.mxu0 0.0
        %450 = vmatpush.msra.mxu0 0.0
        %451 = vmatpush.msra.mxu0 0.0
        %452 = vmatpush.msra.mxu0 0.0
        %453 = vmatpush.msra.mxu0 0.0
        %454 = vmatpush.msra.mxu0 0.0
        %455 = vmatpush.msra.mxu0 %v284
        %456 = vmatpush.msra.mxu0 %v281
        %457 = vmatmul.f32.gmra.mxu0 %v346
        %v458 = vpop.f32.mrf.mxu0
        %v459 = vadd.f32 0.0, %v458
        %460 = vmatmul.f32.gmra.mxu0 %v349
        %v461 = vpop.f32.mrf.mxu0
        %v462 = vadd.f32 0.0, %v461
        %463 = vmatmul.f32.gmra.mxu0 %v352
        %v464 = vpop.f32.mrf.mxu0
        %v465 = vadd.f32 0.0, %v464
        %466 = vmatmul.f32.gmra.mxu0 %v355
        %v467 = vpop.f32.mrf.mxu0
        %v468 = vadd.f32 0.0, %v467
        %469 = vmatmul.f32.gmra.mxu0 %v358
        %v470 = vpop.f32.mrf.mxu0
        %v471 = vadd.f32 0.0, %v470
        %472 = vmatmul.f32.gmra.mxu0 %v361
        %v473 = vpop.f32.mrf.mxu0
        %v474 = vadd.f32 0.0, %v473
        %475 = vmatmul.f32.gmra.mxu0 %v364
        %v476 = vpop.f32.mrf.mxu0
        %v477 = vadd.f32 0.0, %v476
        %478 = vmatmul.f32.gmra.mxu0 %v367
        %v479 = vpop.f32.mrf.mxu0
        %v480 = vadd.f32 0.0, %v479
        %481 = vmatmul.f32.gmra.mxu0 %v370
        %v482 = vpop.f32.mrf.mxu0
        %v483 = vadd.f32 0.0, %v482
        %484 = vmatmul.f32.gmra.mxu0 %v373
        %v485 = vpop.f32.mrf.mxu0
        %v486 = vadd.f32 0.0, %v485
        %487 = vmatmul.f32.gmra.mxu0 %v376
        %v488 = vpop.f32.mrf.mxu0
        %v489 = vadd.f32 0.0, %v488
        %490 = vmatmul.f32.gmra.mxu0 %v379
        %v491 = vpop.f32.mrf.mxu0
        %v492 = vadd.f32 0.0, %v491
        %493 = vmatmul.f32.gmra.mxu0 %v382
        %v494 = vpop.f32.mrf.mxu0
        %v495 = vadd.f32 0.0, %v494
        %496 = vmatmul.f32.gmra.mxu0 %v385
        %v497 = vpop.f32.mrf.mxu0
        %v498 = vadd.f32 0.0, %v497
        %499 = vmatmul.f32.gmra.mxu0 %v388
        %v500 = vpop.f32.mrf.mxu0
        %v501 = vadd.f32 0.0, %v500
        %502 = vmatmul.f32.gmra.mxu0 %v391
        %v503 = vpop.f32.mrf.mxu0
        %v504 = vadd.f32 0.0, %v503
        %505 = vmatmul.f32.gmra.mxu0 %v394
        %v506 = vpop.f32.mrf.mxu0
        %v507 = vadd.f32 0.0, %v506
        %508 = vmatmul.f32.gmra.mxu0 %v397
        %v509 = vpop.f32.mrf.mxu0
        %v510 = vadd.f32 0.0, %v509
        %511 = vmatmul.f32.gmra.mxu0 %v400
        %v512 = vpop.f32.mrf.mxu0
        %v513 = vadd.f32 0.0, %v512
        %514 = vmatmul.f32.gmra.mxu0 %v403
        %v515 = vpop.f32.mrf.mxu0
        %v516 = vadd.f32 0.0, %v515
        %517 = vmatmul.f32.gmra.mxu0 %v406
        %v518 = vpop.f32.mrf.mxu0
        %v519 = vadd.f32 0.0, %v518
        %520 = vmatmul.f32.gmra.mxu0 %v409
        %v521 = vpop.f32.mrf.mxu0
        %v522 = vadd.f32 0.0, %v521
        %523 = vmatmul.f32.gmra.mxu0 %v412
        %v524 = vpop.f32.mrf.mxu0
        %v525 = vadd.f32 0.0, %v524
        %526 = vmatmul.f32.gmra.mxu0 %v415
        %v527 = vpop.f32.mrf.mxu0
        %v528 = vadd.f32 0.0, %v527
        %529 = vmatmul.f32.gmra.mxu0 %v418
        %v530 = vpop.f32.mrf.mxu0
        %v531 = vadd.f32 0.0, %v530
        %532 = vmatmul.f32.gmra.mxu0 %v421
        %v533 = vpop.f32.mrf.mxu0
        %v534 = vadd.f32 0.0, %v533
        %535 = vmatmul.f32.gmra.mxu0 %v424
        %v536 = vpop.f32.mrf.mxu0
        %v537 = vadd.f32 0.0, %v536
        %538 = vmatmul.f32.gmra.mxu0 %v427
        %v539 = vpop.f32.mrf.mxu0
        %v540 = vadd.f32 0.0, %v539
        %541 = vmatmul.f32.gmra.mxu0 %v430
        %v542 = vpop.f32.mrf.mxu0
        %v543 = vadd.f32 0.0, %v542
        %544 = vmatmul.f32.gmra.mxu0 %v433
        %v545 = vpop.f32.mrf.mxu0
        %v546 = vadd.f32 0.0, %v545
        %547 = vmatmul.f32.gmra.mxu0 %v436
        %v548 = vpop.f32.mrf.mxu0
        %v549 = vadd.f32 0.0, %v548
        %550 = vmatmul.f32.gmra.mxu0 %v439
        %v551 = vpop.f32.mrf.mxu0
        %v552 = vadd.f32 0.0, %v551
        %553 = vdwg.mxu0
        %554 = vmatpush.msra.mxu0 0.0
        %555 = vmatpush.msra.mxu0 0.0
        %556 = vmatpush.msra.mxu0 0.0
        %557 = vmatpush.msra.mxu0 0.0
        %558 = vmatpush.msra.mxu0 0.0
        %559 = vmatpush.msra.mxu0 0.0
        %560 = vmatpush.msra.mxu0 0.0
        %561 = vmatpush.msra.mxu0 0.0
        %562 = vmatpush.msra.mxu0 0.0
        %563 = vmatpush.msra.mxu0 0.0
        %564 = vmatpush.msra.mxu0 0.0
        %565 = vmatpush.msra.mxu0 0.0
        %566 = vmatpush.msra.mxu0 0.0
        %567 = vmatpush.msra.mxu0 0.0
        %568 = vmatpush.msra.mxu0 %v325
        %569 = vmatpush.msra.mxu0 %v322
        %570 = vmatmul.f32.gmra.mxu0 %v346
        %v571 = vpop.f32.mrf.mxu0
        %v572 = vadd.f32 0.0, %v571
        %573 = vmatmul.f32.gmra.mxu0 %v349
        %v574 = vpop.f32.mrf.mxu0
        %v575 = vadd.f32 0.0, %v574
        %576 = vmatmul.f32.gmra.mxu0 %v352
        %v577 = vpop.f32.mrf.mxu0
        %v578 = vadd.f32 0.0, %v577
        %579 = vmatmul.f32.gmra.mxu0 %v355
        %v580 = vpop.f32.mrf.mxu0
        %v581 = vadd.f32 0.0, %v580
        %582 = vmatmul.f32.gmra.mxu0 %v358
        %v583 = vpop.f32.mrf.mxu0
        %v584 = vadd.f32 0.0, %v583
        %585 = vmatmul.f32.gmra.mxu0 %v361
        %v586 = vpop.f32.mrf.mxu0
        %v587 = vadd.f32 0.0, %v586
        %588 = vmatmul.f32.gmra.mxu0 %v364
        %v589 = vpop.f32.mrf.mxu0
        %v590 = vadd.f32 0.0, %v589
        %591 = vmatmul.f32.gmra.mxu0 %v367
        %v592 = vpop.f32.mrf.mxu0
        %v593 = vadd.f32 0.0, %v592
        %594 = vmatmul.f32.gmra.mxu0 %v370
        %v595 = vpop.f32.mrf.mxu0
        %v596 = vadd.f32 0.0, %v595
        %597 = vmatmul.f32.gmra.mxu0 %v373
        %v598 = vpop.f32.mrf.mxu0
        %v599 = vadd.f32 0.0, %v598
        %600 = vmatmul.f32.gmra.mxu0 %v376
        %v601 = vpop.f32.mrf.mxu0
        %v602 = vadd.f32 0.0, %v601
        %603 = vmatmul.f32.gmra.mxu0 %v379
        %v604 = vpop.f32.mrf.mxu0
        %v605 = vadd.f32 0.0, %v604
        %606 = vmatmul.f32.gmra.mxu0 %v382
        %v607 = vpop.f32.mrf.mxu0
        %v608 = vadd.f32 0.0, %v607
        %609 = vmatmul.f32.gmra.mxu0 %v385
        %v610 = vpop.f32.mrf.mxu0
        %v611 = vadd.f32 0.0, %v610
        %612 = vmatmul.f32.gmra.mxu0 %v388
        %v613 = vpop.f32.mrf.mxu0
        %v614 = vadd.f32 0.0, %v613
        %615 = vmatmul.f32.gmra.mxu0 %v391
        %v616 = vpop.f32.mrf.mxu0
        %v617 = vadd.f32 0.0, %v616
        %618 = vmatmul.f32.gmra.mxu0 %v394
        %v619 = vpop.f32.mrf.mxu0
        %v620 = vadd.f32 0.0, %v619
        %621 = vmatmul.f32.gmra.mxu0 %v397
        %v622 = vpop.f32.mrf.mxu0
        %v623 = vadd.f32 0.0, %v622
        %624 = vmatmul.f32.gmra.mxu0 %v400
        %v625 = vpop.f32.mrf.mxu0
        %v626 = vadd.f32 0.0, %v625
        %627 = vmatmul.f32.gmra.mxu0 %v403
        %v628 = vpop.f32.mrf.mxu0
        %v629 = vadd.f32 0.0, %v628
        %630 = vmatmul.f32.gmra.mxu0 %v406
        %v631 = vpop.f32.mrf.mxu0
        %v632 = vadd.f32 0.0, %v631
        %633 = vmatmul.f32.gmra.mxu0 %v409
        %v634 = vpop.f32.mrf.mxu0
        %v635 = vadd.f32 0.0, %v634
        %636 = vmatmul.f32.gmra.mxu0 %v412
        %v637 = vpop.f32.mrf.mxu0
        %v638 = vadd.f32 0.0, %v637
        %639 = vmatmul.f32.gmra.mxu0 %v415
        %v640 = vpop.f32.mrf.mxu0
        %v641 = vadd.f32 0.0, %v640
        %642 = vmatmul.f32.gmra.mxu0 %v418
        %v643 = vpop.f32.mrf.mxu0
        %v644 = vadd.f32 0.0, %v643
        %645 = vmatmul.f32.gmra.mxu0 %v421
        %v646 = vpop.f32.mrf.mxu0
        %v647 = vadd.f32 0.0, %v646
        %648 = vmatmul.f32.gmra.mxu0 %v424
        %v649 = vpop.f32.mrf.mxu0
        %v650 = vadd.f32 0.0, %v649
        %651 = vmatmul.f32.gmra.mxu0 %v427
        %v652 = vpop.f32.mrf.mxu0
        %v653 = vadd.f32 0.0, %v652
        %654 = vmatmul.f32.gmra.mxu0 %v430
        %v655 = vpop.f32.mrf.mxu0
        %v656 = vadd.f32 0.0, %v655
        %657 = vmatmul.f32.gmra.mxu0 %v433
        %v658 = vpop.f32.mrf.mxu0
        %v659 = vadd.f32 0.0, %v658
        %660 = vmatmul.f32.gmra.mxu0 %v436
        %v661 = vpop.f32.mrf.mxu0
        %v662 = vadd.f32 0.0, %v661
        %663 = vmatmul.f32.gmra.mxu0 %v439
        %v664 = vpop.f32.mrf.mxu0
        %v665 = vadd.f32 0.0, %v664
        %666 = vdwg.mxu0
        %667 = vst [vmem:[%s191] sm:$0xff] %v459
        %668 = vst [vmem:[%s191 + $0x8] sm:$0xff] %v572
        %669 = vst [vmem:[%s191 + $0x10] sm:$0xff] %v462
        %670 = vst [vmem:[%s191 + $0x18] sm:$0xff] %v575
        %671 = vst [vmem:[%s191 + $0x20] sm:$0xff] %v465
        %672 = vst [vmem:[%s191 + $0x28] sm:$0xff] %v578
        %673 = vst [vmem:[%s191 + $0x30] sm:$0xff] %v468
        %674 = vst [vmem:[%s191 + $0x38] sm:$0xff] %v581
        %675 = vst [vmem:[%s191 + $0x40] sm:$0xff] %v471
        %676 = vst [vmem:[%s191 + $0x48] sm:$0xff] %v584
        %677 = vst [vmem:[%s191 + $0x50] sm:$0xff] %v474
        %678 = vst [vmem:[%s191 + $0x58] sm:$0xff] %v587
        %679 = vst [vmem:[%s191 + $0x60] sm:$0xff] %v477
        %680 = vst [vmem:[%s191 + $0x68] sm:$0xff] %v590
        %681 = vst [vmem:[%s191 + $0x70] sm:$0xff] %v480
        %682 = vst [vmem:[%s191 + $0x78] sm:$0xff] %v593
        %683 = vst [vmem:[%s191 + $0x80] sm:$0xff] %v483
        %684 = vst [vmem:[%s191 + $0x88] sm:$0xff] %v596
        %685 = vst [vmem:[%s191 + $0x90] sm:$0xff] %v486
        %686 = vst [vmem:[%s191 + $0x98] sm:$0xff] %v599
        %687 = vst [vmem:[%s191 + $0xa0] sm:$0xff] %v489
        %688 = vst [vmem:[%s191 + $0xa8] sm:$0xff] %v602
        %689 = vst [vmem:[%s191 + $0xb0] sm:$0xff] %v492
        %690 = vst [vmem:[%s191 + $0xb8] sm:$0xff] %v605
        %691 = vst [vmem:[%s191 + $0xc0] sm:$0xff] %v495
        %692 = vst [vmem:[%s191 + $0xc8] sm:$0xff] %v608
        %693 = vst [vmem:[%s191 + $0xd0] sm:$0xff] %v498
        %694 = vst [vmem:[%s191 + $0xd8] sm:$0xff] %v611
        %695 = vst [vmem:[%s191 + $0xe0] sm:$0xff] %v501
        %696 = vst [vmem:[%s191 + $0xe8] sm:$0xff] %v614
        %697 = vst [vmem:[%s191 + $0xf0] sm:$0xff] %v504
        %698 = vst [vmem:[%s191 + $0xf8] sm:$0xff] %v617
        %699 = vst [vmem:[%s191 + $0x100] sm:$0xff] %v507
        %700 = vst [vmem:[%s191 + $0x108] sm:$0xff] %v620
        %701 = vst [vmem:[%s191 + $0x110] sm:$0xff] %v510
        %702 = vst [vmem:[%s191 + $0x118] sm:$0xff] %v623
        %703 = vst [vmem:[%s191 + $0x120] sm:$0xff] %v513
        %704 = vst [vmem:[%s191 + $0x128] sm:$0xff] %v626
        %705 = vst [vmem:[%s191 + $0x130] sm:$0xff] %v516
        %706 = vst [vmem:[%s191 + $0x138] sm:$0xff] %v629
        %707 = vst [vmem:[%s191 + $0x140] sm:$0xff] %v519
        %708 = vst [vmem:[%s191 + $0x148] sm:$0xff] %v632
        %709 = vst [vmem:[%s191 + $0x150] sm:$0xff] %v522
        %710 = vst [vmem:[%s191 + $0x158] sm:$0xff] %v635
        %711 = vst [vmem:[%s191 + $0x160] sm:$0xff] %v525
        %712 = vst [vmem:[%s191 + $0x168] sm:$0xff] %v638
        %713 = vst [vmem:[%s191 + $0x170] sm:$0xff] %v528
        %714 = vst [vmem:[%s191 + $0x178] sm:$0xff] %v641
        %715 = vst [vmem:[%s191 + $0x180] sm:$0xff] %v531
        %716 = vst [vmem:[%s191 + $0x188] sm:$0xff] %v644
        %717 = vst [vmem:[%s191 + $0x190] sm:$0xff] %v534
        %718 = vst [vmem:[%s191 + $0x198] sm:$0xff] %v647
        %719 = vst [vmem:[%s191 + $0x1a0] sm:$0xff] %v537
        %720 = vst [vmem:[%s191 + $0x1a8] sm:$0xff] %v650
        %721 = vst [vmem:[%s191 + $0x1b0] sm:$0xff] %v540
        %722 = vst [vmem:[%s191 + $0x1b8] sm:$0xff] %v653
        %723 = vst [vmem:[%s191 + $0x1c0] sm:$0xff] %v543
        %724 = vst [vmem:[%s191 + $0x1c8] sm:$0xff] %v656
        %725 = vst [vmem:[%s191 + $0x1d0] sm:$0xff] %v546
        %726 = vst [vmem:[%s191 + $0x1d8] sm:$0xff] %v659
        %727 = vst [vmem:[%s191 + $0x1e0] sm:$0xff] %v549
        %728 = vst [vmem:[%s191 + $0x1e8] sm:$0xff] %v662
        %729 = vst [vmem:[%s191 + $0x1f0] sm:$0xff] %v552
        %730 = vst [vmem:[%s191 + $0x1f8] sm:$0xff] %v665
        %731 = vmatpush.msra.mxu0 0.0
        %732 = vmatpush.msra.mxu0 0.0
        %733 = vmatpush.msra.mxu0 0.0
        %734 = vmatpush.msra.mxu0 0.0
        %735 = vmatpush.msra.mxu0 0.0
        %736 = vmatpush.msra.mxu0 0.0
        %737 = vmatpush.msra.mxu0 0.0
        %738 = vmatpush.msra.mxu0 0.0
        %739 = vmatpush.msra.mxu0 0.0
        %740 = vmatpush.msra.mxu0 0.0
        %741 = vmatpush.msra.mxu0 0.0
        %742 = vmatpush.msra.mxu0 0.0
        %743 = vmatpush.msra.mxu0 0.0
        %744 = vmatpush.msra.mxu0 0.0
        %745 = vmatpush.msra.mxu0 %v290
        %746 = vmatpush.msra.mxu0 %v287
        %747 = vmatmul.f32.gmra.mxu0 %v346
        %v748 = vpop.f32.mrf.mxu0
        %v749 = vadd.f32 0.0, %v748
        %750 = vmatmul.f32.gmra.mxu0 %v349
        %v751 = vpop.f32.mrf.mxu0
        %v752 = vadd.f32 0.0, %v751
        %753 = vmatmul.f32.gmra.mxu0 %v352
        %v754 = vpop.f32.mrf.mxu0
        %v755 = vadd.f32 0.0, %v754
        %756 = vmatmul.f32.gmra.mxu0 %v355
        %v757 = vpop.f32.mrf.mxu0
        %v758 = vadd.f32 0.0, %v757
        %759 = vmatmul.f32.gmra.mxu0 %v358
        %v760 = vpop.f32.mrf.mxu0
        %v761 = vadd.f32 0.0, %v760
        %762 = vmatmul.f32.gmra.mxu0 %v361
        %v763 = vpop.f32.mrf.mxu0
        %v764 = vadd.f32 0.0, %v763
        %765 = vmatmul.f32.gmra.mxu0 %v364
        %v766 = vpop.f32.mrf.mxu0
        %v767 = vadd.f32 0.0, %v766
        %768 = vmatmul.f32.gmra.mxu0 %v367
        %v769 = vpop.f32.mrf.mxu0
        %v770 = vadd.f32 0.0, %v769
        %771 = vmatmul.f32.gmra.mxu0 %v370
        %v772 = vpop.f32.mrf.mxu0
        %v773 = vadd.f32 0.0, %v772
        %774 = vmatmul.f32.gmra.mxu0 %v373
        %v775 = vpop.f32.mrf.mxu0
        %v776 = vadd.f32 0.0, %v775
        %777 = vmatmul.f32.gmra.mxu0 %v376
        %v778 = vpop.f32.mrf.mxu0
        %v779 = vadd.f32 0.0, %v778
        %780 = vmatmul.f32.gmra.mxu0 %v379
        %v781 = vpop.f32.mrf.mxu0
        %v782 = vadd.f32 0.0, %v781
        %783 = vmatmul.f32.gmra.mxu0 %v382
        %v784 = vpop.f32.mrf.mxu0
        %v785 = vadd.f32 0.0, %v784
        %786 = vmatmul.f32.gmra.mxu0 %v385
        %v787 = vpop.f32.mrf.mxu0
        %v788 = vadd.f32 0.0, %v787
        %789 = vmatmul.f32.gmra.mxu0 %v388
        %v790 = vpop.f32.mrf.mxu0
        %v791 = vadd.f32 0.0, %v790
        %792 = vmatmul.f32.gmra.mxu0 %v391
        %v793 = vpop.f32.mrf.mxu0
        %v794 = vadd.f32 0.0, %v793
        %795 = vmatmul.f32.gmra.mxu0 %v394
        %v796 = vpop.f32.mrf.mxu0
        %v797 = vadd.f32 0.0, %v796
        %798 = vmatmul.f32.gmra.mxu0 %v397
        %v799 = vpop.f32.mrf.mxu0
        %v800 = vadd.f32 0.0, %v799
        %801 = vmatmul.f32.gmra.mxu0 %v400
        %v802 = vpop.f32.mrf.mxu0
        %v803 = vadd.f32 0.0, %v802
        %804 = vmatmul.f32.gmra.mxu0 %v403
        %v805 = vpop.f32.mrf.mxu0
        %v806 = vadd.f32 0.0, %v805
        %807 = vmatmul.f32.gmra.mxu0 %v406
        %v808 = vpop.f32.mrf.mxu0
        %v809 = vadd.f32 0.0, %v808
        %810 = vmatmul.f32.gmra.mxu0 %v409
        %v811 = vpop.f32.mrf.mxu0
        %v812 = vadd.f32 0.0, %v811
        %813 = vmatmul.f32.gmra.mxu0 %v412
        %v814 = vpop.f32.mrf.mxu0
        %v815 = vadd.f32 0.0, %v814
        %816 = vmatmul.f32.gmra.mxu0 %v415
        %v817 = vpop.f32.mrf.mxu0
        %v818 = vadd.f32 0.0, %v817
        %819 = vmatmul.f32.gmra.mxu0 %v418
        %v820 = vpop.f32.mrf.mxu0
        %v821 = vadd.f32 0.0, %v820
        %822 = vmatmul.f32.gmra.mxu0 %v421
        %v823 = vpop.f32.mrf.mxu0
        %v824 = vadd.f32 0.0, %v823
        %825 = vmatmul.f32.gmra.mxu0 %v424
        %v826 = vpop.f32.mrf.mxu0
        %v827 = vadd.f32 0.0, %v826
        %828 = vmatmul.f32.gmra.mxu0 %v427
        %v829 = vpop.f32.mrf.mxu0
        %v830 = vadd.f32 0.0, %v829
        %831 = vmatmul.f32.gmra.mxu0 %v430
        %v832 = vpop.f32.mrf.mxu0
        %v833 = vadd.f32 0.0, %v832
        %834 = vmatmul.f32.gmra.mxu0 %v433
        %v835 = vpop.f32.mrf.mxu0
        %v836 = vadd.f32 0.0, %v835
        %837 = vmatmul.f32.gmra.mxu0 %v436
        %v838 = vpop.f32.mrf.mxu0
        %v839 = vadd.f32 0.0, %v838
        %840 = vmatmul.f32.gmra.mxu0 %v439
        %v841 = vpop.f32.mrf.mxu0
        %v842 = vadd.f32 0.0, %v841
        %843 = vdwg.mxu0
        %844 = vmatpush.msra.mxu0 0.0
        %845 = vmatpush.msra.mxu0 0.0
        %846 = vmatpush.msra.mxu0 0.0
        %847 = vmatpush.msra.mxu0 0.0
        %848 = vmatpush.msra.mxu0 0.0
        %849 = vmatpush.msra.mxu0 0.0
        %850 = vmatpush.msra.mxu0 0.0
        %851 = vmatpush.msra.mxu0 0.0
        %852 = vmatpush.msra.mxu0 0.0
        %853 = vmatpush.msra.mxu0 0.0
        %854 = vmatpush.msra.mxu0 0.0
        %855 = vmatpush.msra.mxu0 0.0
        %856 = vmatpush.msra.mxu0 0.0
        %857 = vmatpush.msra.mxu0 0.0
        %858 = vmatpush.msra.mxu0 %v331
        %859 = vmatpush.msra.mxu0 %v328
        %860 = vmatmul.f32.gmra.mxu0 %v346
        %v861 = vpop.f32.mrf.mxu0
        %v862 = vadd.f32 0.0, %v861
        %863 = vmatmul.f32.gmra.mxu0 %v349
        %v864 = vpop.f32.mrf.mxu0
        %v865 = vadd.f32 0.0, %v864
        %866 = vmatmul.f32.gmra.mxu0 %v352
        %v867 = vpop.f32.mrf.mxu0
        %v868 = vadd.f32 0.0, %v867
        %869 = vmatmul.f32.gmra.mxu0 %v355
        %v870 = vpop.f32.mrf.mxu0
        %v871 = vadd.f32 0.0, %v870
        %872 = vmatmul.f32.gmra.mxu0 %v358
        %v873 = vpop.f32.mrf.mxu0
        %v874 = vadd.f32 0.0, %v873
        %875 = vmatmul.f32.gmra.mxu0 %v361
        %v876 = vpop.f32.mrf.mxu0
        %v877 = vadd.f32 0.0, %v876
        %878 = vmatmul.f32.gmra.mxu0 %v364
        %v879 = vpop.f32.mrf.mxu0
        %v880 = vadd.f32 0.0, %v879
        %881 = vmatmul.f32.gmra.mxu0 %v367
        %v882 = vpop.f32.mrf.mxu0
        %v883 = vadd.f32 0.0, %v882
        %884 = vmatmul.f32.gmra.mxu0 %v370
        %v885 = vpop.f32.mrf.mxu0
        %v886 = vadd.f32 0.0, %v885
        %887 = vmatmul.f32.gmra.mxu0 %v373
        %v888 = vpop.f32.mrf.mxu0
        %v889 = vadd.f32 0.0, %v888
        %890 = vmatmul.f32.gmra.mxu0 %v376
        %v891 = vpop.f32.mrf.mxu0
        %v892 = vadd.f32 0.0, %v891
        %893 = vmatmul.f32.gmra.mxu0 %v379
        %v894 = vpop.f32.mrf.mxu0
        %v895 = vadd.f32 0.0, %v894
        %896 = vmatmul.f32.gmra.mxu0 %v382
        %v897 = vpop.f32.mrf.mxu0
        %v898 = vadd.f32 0.0, %v897
        %899 = vmatmul.f32.gmra.mxu0 %v385
        %v900 = vpop.f32.mrf.mxu0
        %v901 = vadd.f32 0.0, %v900
        %902 = vmatmul.f32.gmra.mxu0 %v388
        %v903 = vpop.f32.mrf.mxu0
        %v904 = vadd.f32 0.0, %v903
        %905 = vmatmul.f32.gmra.mxu0 %v391
        %v906 = vpop.f32.mrf.mxu0
        %v907 = vadd.f32 0.0, %v906
        %908 = vmatmul.f32.gmra.mxu0 %v394
        %v909 = vpop.f32.mrf.mxu0
        %v910 = vadd.f32 0.0, %v909
        %911 = vmatmul.f32.gmra.mxu0 %v397
        %v912 = vpop.f32.mrf.mxu0
        %v913 = vadd.f32 0.0, %v912
        %914 = vmatmul.f32.gmra.mxu0 %v400
        %v915 = vpop.f32.mrf.mxu0
        %v916 = vadd.f32 0.0, %v915
        %917 = vmatmul.f32.gmra.mxu0 %v403
        %v918 = vpop.f32.mrf.mxu0
        %v919 = vadd.f32 0.0, %v918
        %920 = vmatmul.f32.gmra.mxu0 %v406
        %v921 = vpop.f32.mrf.mxu0
        %v922 = vadd.f32 0.0, %v921
        %923 = vmatmul.f32.gmra.mxu0 %v409
        %v924 = vpop.f32.mrf.mxu0
        %v925 = vadd.f32 0.0, %v924
        %926 = vmatmul.f32.gmra.mxu0 %v412
        %v927 = vpop.f32.mrf.mxu0
        %v928 = vadd.f32 0.0, %v927
        %929 = vmatmul.f32.gmra.mxu0 %v415
        %v930 = vpop.f32.mrf.mxu0
        %v931 = vadd.f32 0.0, %v930
        %932 = vmatmul.f32.gmra.mxu0 %v418
        %v933 = vpop.f32.mrf.mxu0
        %v934 = vadd.f32 0.0, %v933
        %935 = vmatmul.f32.gmra.mxu0 %v421
        %v936 = vpop.f32.mrf.mxu0
        %v937 = vadd.f32 0.0, %v936
        %938 = vmatmul.f32.gmra.mxu0 %v424
        %v939 = vpop.f32.mrf.mxu0
        %v940 = vadd.f32 0.0, %v939
        %941 = vmatmul.f32.gmra.mxu0 %v427
        %v942 = vpop.f32.mrf.mxu0
        %v943 = vadd.f32 0.0, %v942
        %944 = vmatmul.f32.gmra.mxu0 %v430
        %v945 = vpop.f32.mrf.mxu0
        %v946 = vadd.f32 0.0, %v945
        %947 = vmatmul.f32.gmra.mxu0 %v433
        %v948 = vpop.f32.mrf.mxu0
        %v949 = vadd.f32 0.0, %v948
        %950 = vmatmul.f32.gmra.mxu0 %v436
        %v951 = vpop.f32.mrf.mxu0
        %v952 = vadd.f32 0.0, %v951
        %953 = vmatmul.f32.gmra.mxu0 %v439
        %v954 = vpop.f32.mrf.mxu0
        %v955 = vadd.f32 0.0, %v954
        %956 = vdwg.mxu0
        %s957 = scalar_lea.vmem %s191, 512 [#allocation5]
        %958 = vst [vmem:[%s957] sm:$0xff] %v749
        %959 = vst [vmem:[%s957 + $0x8] sm:$0xff] %v862
        %960 = vst [vmem:[%s957 + $0x10] sm:$0xff] %v752
        %961 = vst [vmem:[%s957 + $0x18] sm:$0xff] %v865
        %962 = vst [vmem:[%s957 + $0x20] sm:$0xff] %v755
        %963 = vst [vmem:[%s957 + $0x28] sm:$0xff] %v868
        %964 = vst [vmem:[%s957 + $0x30] sm:$0xff] %v758
        %965 = vst [vmem:[%s957 + $0x38] sm:$0xff] %v871
        %966 = vst [vmem:[%s957 + $0x40] sm:$0xff] %v761
        %967 = vst [vmem:[%s957 + $0x48] sm:$0xff] %v874
        %968 = vst [vmem:[%s957 + $0x50] sm:$0xff] %v764
        %969 = vst [vmem:[%s957 + $0x58] sm:$0xff] %v877
        %970 = vst [vmem:[%s957 + $0x60] sm:$0xff] %v767
        %971 = vst [vmem:[%s957 + $0x68] sm:$0xff] %v880
        %972 = vst [vmem:[%s957 + $0x70] sm:$0xff] %v770
        %973 = vst [vmem:[%s957 + $0x78] sm:$0xff] %v883
        %974 = vst [vmem:[%s957 + $0x80] sm:$0xff] %v773
        %975 = vst [vmem:[%s957 + $0x88] sm:$0xff] %v886
        %976 = vst [vmem:[%s957 + $0x90] sm:$0xff] %v776
        %977 = vst [vmem:[%s957 + $0x98] sm:$0xff] %v889
        %978 = vst [vmem:[%s957 + $0xa0] sm:$0xff] %v779
        %979 = vst [vmem:[%s957 + $0xa8] sm:$0xff] %v892
        %980 = vst [vmem:[%s957 + $0xb0] sm:$0xff] %v782
        %981 = vst [vmem:[%s957 + $0xb8] sm:$0xff] %v895
        %982 = vst [vmem:[%s957 + $0xc0] sm:$0xff] %v785
        %983 = vst [vmem:[%s957 + $0xc8] sm:$0xff] %v898
        %984 = vst [vmem:[%s957 + $0xd0] sm:$0xff] %v788
        %985 = vst [vmem:[%s957 + $0xd8] sm:$0xff] %v901
        %986 = vst [vmem:[%s957 + $0xe0] sm:$0xff] %v791
        %987 = vst [vmem:[%s957 + $0xe8] sm:$0xff] %v904
        %988 = vst [vmem:[%s957 + $0xf0] sm:$0xff] %v794
        %989 = vst [vmem:[%s957 + $0xf8] sm:$0xff] %v907
        %990 = vst [vmem:[%s957 + $0x100] sm:$0xff] %v797
        %991 = vst [vmem:[%s957 + $0x108] sm:$0xff] %v910
        %992 = vst [vmem:[%s957 + $0x110] sm:$0xff] %v800
        %993 = vst [vmem:[%s957 + $0x118] sm:$0xff] %v913
        %994 = vst [vmem:[%s957 + $0x120] sm:$0xff] %v803
        %995 = vst [vmem:[%s957 + $0x128] sm:$0xff] %v916
        %996 = vst [vmem:[%s957 + $0x130] sm:$0xff] %v806
        %997 = vst [vmem:[%s957 + $0x138] sm:$0xff] %v919
        %998 = vst [vmem:[%s957 + $0x140] sm:$0xff] %v809
        %999 = vst [vmem:[%s957 + $0x148] sm:$0xff] %v922
        %1000 = vst [vmem:[%s957 + $0x150] sm:$0xff] %v812
        %1001 = vst [vmem:[%s957 + $0x158] sm:$0xff] %v925
        %1002 = vst [vmem:[%s957 + $0x160] sm:$0xff] %v815
        %1003 = vst [vmem:[%s957 + $0x168] sm:$0xff] %v928
        %1004 = vst [vmem:[%s957 + $0x170] sm:$0xff] %v818
        %1005 = vst [vmem:[%s957 + $0x178] sm:$0xff] %v931
        %1006 = vst [vmem:[%s957 + $0x180] sm:$0xff] %v821
        %1007 = vst [vmem:[%s957 + $0x188] sm:$0xff] %v934
        %1008 = vst [vmem:[%s957 + $0x190] sm:$0xff] %v824
        %1009 = vst [vmem:[%s957 + $0x198] sm:$0xff] %v937
        %1010 = vst [vmem:[%s957 + $0x1a0] sm:$0xff] %v827
        %1011 = vst [vmem:[%s957 + $0x1a8] sm:$0xff] %v940
        %1012 = vst [vmem:[%s957 + $0x1b0] sm:$0xff] %v830
        %1013 = vst [vmem:[%s957 + $0x1b8] sm:$0xff] %v943
        %1014 = vst [vmem:[%s957 + $0x1c0] sm:$0xff] %v833
        %1015 = vst [vmem:[%s957 + $0x1c8] sm:$0xff] %v946
        %1016 = vst [vmem:[%s957 + $0x1d0] sm:$0xff] %v836
        %1017 = vst [vmem:[%s957 + $0x1d8] sm:$0xff] %v949
        %1018 = vst [vmem:[%s957 + $0x1e0] sm:$0xff] %v839
        %1019 = vst [vmem:[%s957 + $0x1e8] sm:$0xff] %v952
        %1020 = vst [vmem:[%s957 + $0x1f0] sm:$0xff] %v842
        %1021 = vst [vmem:[%s957 + $0x1f8] sm:$0xff] %v955
        %1022 = vmatpush.msra.mxu0 0.0
        %1023 = vmatpush.msra.mxu0 0.0
        %1024 = vmatpush.msra.mxu0 0.0
        %1025 = vmatpush.msra.mxu0 0.0
        %1026 = vmatpush.msra.mxu0 0.0
        %1027 = vmatpush.msra.mxu0 0.0
        %1028 = vmatpush.msra.mxu0 0.0
        %1029 = vmatpush.msra.mxu0 0.0
        %1030 = vmatpush.msra.mxu0 0.0
        %1031 = vmatpush.msra.mxu0 0.0
        %1032 = vmatpush.msra.mxu0 0.0
        %1033 = vmatpush.msra.mxu0 0.0
        %1034 = vmatpush.msra.mxu0 0.0
        %1035 = vmatpush.msra.mxu0 0.0
        %1036 = vmatpush.msra.mxu0 %v296
        %1037 = vmatpush.msra.mxu0 %v293
        %1038 = vmatmul.f32.gmra.mxu0 %v346
        %v1039 = vpop.f32.mrf.mxu0
        %v1040 = vadd.f32 0.0, %v1039
        %1041 = vmatmul.f32.gmra.mxu0 %v349
        %v1042 = vpop.f32.mrf.mxu0
        %v1043 = vadd.f32 0.0, %v1042
        %1044 = vmatmul.f32.gmra.mxu0 %v352
        %v1045 = vpop.f32.mrf.mxu0
        %v1046 = vadd.f32 0.0, %v1045
        %1047 = vmatmul.f32.gmra.mxu0 %v355
        %v1048 = vpop.f32.mrf.mxu0
        %v1049 = vadd.f32 0.0, %v1048
        %1050 = vmatmul.f32.gmra.mxu0 %v358
        %v1051 = vpop.f32.mrf.mxu0
        %v1052 = vadd.f32 0.0, %v1051
        %1053 = vmatmul.f32.gmra.mxu0 %v361
        %v1054 = vpop.f32.mrf.mxu0
        %v1055 = vadd.f32 0.0, %v1054
        %1056 = vmatmul.f32.gmra.mxu0 %v364
        %v1057 = vpop.f32.mrf.mxu0
        %v1058 = vadd.f32 0.0, %v1057
        %1059 = vmatmul.f32.gmra.mxu0 %v367
        %v1060 = vpop.f32.mrf.mxu0
        %v1061 = vadd.f32 0.0, %v1060
        %1062 = vmatmul.f32.gmra.mxu0 %v370
        %v1063 = vpop.f32.mrf.mxu0
        %v1064 = vadd.f32 0.0, %v1063
        %1065 = vmatmul.f32.gmra.mxu0 %v373
        %v1066 = vpop.f32.mrf.mxu0
        %v1067 = vadd.f32 0.0, %v1066
        %1068 = vmatmul.f32.gmra.mxu0 %v376
        %v1069 = vpop.f32.mrf.mxu0
        %v1070 = vadd.f32 0.0, %v1069
        %1071 = vmatmul.f32.gmra.mxu0 %v379
        %v1072 = vpop.f32.mrf.mxu0
        %v1073 = vadd.f32 0.0, %v1072
        %1074 = vmatmul.f32.gmra.mxu0 %v382
        %v1075 = vpop.f32.mrf.mxu0
        %v1076 = vadd.f32 0.0, %v1075
        %1077 = vmatmul.f32.gmra.mxu0 %v385
        %v1078 = vpop.f32.mrf.mxu0
        %v1079 = vadd.f32 0.0, %v1078
        %1080 = vmatmul.f32.gmra.mxu0 %v388
        %v1081 = vpop.f32.mrf.mxu0
        %v1082 = vadd.f32 0.0, %v1081
        %1083 = vmatmul.f32.gmra.mxu0 %v391
        %v1084 = vpop.f32.mrf.mxu0
        %v1085 = vadd.f32 0.0, %v1084
        %1086 = vmatmul.f32.gmra.mxu0 %v394
        %v1087 = vpop.f32.mrf.mxu0
        %v1088 = vadd.f32 0.0, %v1087
        %1089 = vmatmul.f32.gmra.mxu0 %v397
        %v1090 = vpop.f32.mrf.mxu0
        %v1091 = vadd.f32 0.0, %v1090
        %1092 = vmatmul.f32.gmra.mxu0 %v400
        %v1093 = vpop.f32.mrf.mxu0
        %v1094 = vadd.f32 0.0, %v1093
        %1095 = vmatmul.f32.gmra.mxu0 %v403
        %v1096 = vpop.f32.mrf.mxu0
        %v1097 = vadd.f32 0.0, %v1096
        %1098 = vmatmul.f32.gmra.mxu0 %v406
        %v1099 = vpop.f32.mrf.mxu0
        %v1100 = vadd.f32 0.0, %v1099
        %1101 = vmatmul.f32.gmra.mxu0 %v409
        %v1102 = vpop.f32.mrf.mxu0
        %v1103 = vadd.f32 0.0, %v1102
        %1104 = vmatmul.f32.gmra.mxu0 %v412
        %v1105 = vpop.f32.mrf.mxu0
        %v1106 = vadd.f32 0.0, %v1105
        %1107 = vmatmul.f32.gmra.mxu0 %v415
        %v1108 = vpop.f32.mrf.mxu0
        %v1109 = vadd.f32 0.0, %v1108
        %1110 = vmatmul.f32.gmra.mxu0 %v418
        %v1111 = vpop.f32.mrf.mxu0
        %v1112 = vadd.f32 0.0, %v1111
        %1113 = vmatmul.f32.gmra.mxu0 %v421
        %v1114 = vpop.f32.mrf.mxu0
        %v1115 = vadd.f32 0.0, %v1114
        %1116 = vmatmul.f32.gmra.mxu0 %v424
        %v1117 = vpop.f32.mrf.mxu0
        %v1118 = vadd.f32 0.0, %v1117
        %1119 = vmatmul.f32.gmra.mxu0 %v427
        %v1120 = vpop.f32.mrf.mxu0
        %v1121 = vadd.f32 0.0, %v1120
        %1122 = vmatmul.f32.gmra.mxu0 %v430
        %v1123 = vpop.f32.mrf.mxu0
        %v1124 = vadd.f32 0.0, %v1123
        %1125 = vmatmul.f32.gmra.mxu0 %v433
        %v1126 = vpop.f32.mrf.mxu0
        %v1127 = vadd.f32 0.0, %v1126
        %1128 = vmatmul.f32.gmra.mxu0 %v436
        %v1129 = vpop.f32.mrf.mxu0
        %v1130 = vadd.f32 0.0, %v1129
        %1131 = vmatmul.f32.gmra.mxu0 %v439
        %v1132 = vpop.f32.mrf.mxu0
        %v1133 = vadd.f32 0.0, %v1132
        %1134 = vdwg.mxu0
        %1135 = vmatpush.msra.mxu0 0.0
        %1136 = vmatpush.msra.mxu0 0.0
        %1137 = vmatpush.msra.mxu0 0.0
        %1138 = vmatpush.msra.mxu0 0.0
        %1139 = vmatpush.msra.mxu0 0.0
        %1140 = vmatpush.msra.mxu0 0.0
        %1141 = vmatpush.msra.mxu0 0.0
        %1142 = vmatpush.msra.mxu0 0.0
        %1143 = vmatpush.msra.mxu0 0.0
        %1144 = vmatpush.msra.mxu0 0.0
        %1145 = vmatpush.msra.mxu0 0.0
        %1146 = vmatpush.msra.mxu0 0.0
        %1147 = vmatpush.msra.mxu0 0.0
        %1148 = vmatpush.msra.mxu0 0.0
        %1149 = vmatpush.msra.mxu0 %v337
        %1150 = vmatpush.msra.mxu0 %v334
        %1151 = vmatmul.f32.gmra.mxu0 %v346
        %v1152 = vpop.f32.mrf.mxu0
        %v1153 = vadd.f32 0.0, %v1152
        %1154 = vmatmul.f32.gmra.mxu0 %v349
        %v1155 = vpop.f32.mrf.mxu0
        %v1156 = vadd.f32 0.0, %v1155
        %1157 = vmatmul.f32.gmra.mxu0 %v352
        %v1158 = vpop.f32.mrf.mxu0
        %v1159 = vadd.f32 0.0, %v1158
        %1160 = vmatmul.f32.gmra.mxu0 %v355
        %v1161 = vpop.f32.mrf.mxu0
        %v1162 = vadd.f32 0.0, %v1161
        %1163 = vmatmul.f32.gmra.mxu0 %v358
        %v1164 = vpop.f32.mrf.mxu0
        %v1165 = vadd.f32 0.0, %v1164
        %1166 = vmatmul.f32.gmra.mxu0 %v361
        %v1167 = vpop.f32.mrf.mxu0
        %v1168 = vadd.f32 0.0, %v1167
        %1169 = vmatmul.f32.gmra.mxu0 %v364
        %v1170 = vpop.f32.mrf.mxu0
        %v1171 = vadd.f32 0.0, %v1170
        %1172 = vmatmul.f32.gmra.mxu0 %v367
        %v1173 = vpop.f32.mrf.mxu0
        %v1174 = vadd.f32 0.0, %v1173
        %1175 = vmatmul.f32.gmra.mxu0 %v370
        %v1176 = vpop.f32.mrf.mxu0
        %v1177 = vadd.f32 0.0, %v1176
        %1178 = vmatmul.f32.gmra.mxu0 %v373
        %v1179 = vpop.f32.mrf.mxu0
        %v1180 = vadd.f32 0.0, %v1179
        %1181 = vmatmul.f32.gmra.mxu0 %v376
        %v1182 = vpop.f32.mrf.mxu0
        %v1183 = vadd.f32 0.0, %v1182
        %1184 = vmatmul.f32.gmra.mxu0 %v379
        %v1185 = vpop.f32.mrf.mxu0
        %v1186 = vadd.f32 0.0, %v1185
        %1187 = vmatmul.f32.gmra.mxu0 %v382
        %v1188 = vpop.f32.mrf.mxu0
        %v1189 = vadd.f32 0.0, %v1188
        %1190 = vmatmul.f32.gmra.mxu0 %v385
        %v1191 = vpop.f32.mrf.mxu0
        %v1192 = vadd.f32 0.0, %v1191
        %1193 = vmatmul.f32.gmra.mxu0 %v388
        %v1194 = vpop.f32.mrf.mxu0
        %v1195 = vadd.f32 0.0, %v1194
        %1196 = vmatmul.f32.gmra.mxu0 %v391
        %v1197 = vpop.f32.mrf.mxu0
        %v1198 = vadd.f32 0.0, %v1197
        %1199 = vmatmul.f32.gmra.mxu0 %v394
        %v1200 = vpop.f32.mrf.mxu0
        %v1201 = vadd.f32 0.0, %v1200
        %1202 = vmatmul.f32.gmra.mxu0 %v397
        %v1203 = vpop.f32.mrf.mxu0
        %v1204 = vadd.f32 0.0, %v1203
        %1205 = vmatmul.f32.gmra.mxu0 %v400
        %v1206 = vpop.f32.mrf.mxu0
        %v1207 = vadd.f32 0.0, %v1206
        %1208 = vmatmul.f32.gmra.mxu0 %v403
        %v1209 = vpop.f32.mrf.mxu0
        %v1210 = vadd.f32 0.0, %v1209
        %1211 = vmatmul.f32.gmra.mxu0 %v406
        %v1212 = vpop.f32.mrf.mxu0
        %v1213 = vadd.f32 0.0, %v1212
        %1214 = vmatmul.f32.gmra.mxu0 %v409
        %v1215 = vpop.f32.mrf.mxu0
        %v1216 = vadd.f32 0.0, %v1215
        %1217 = vmatmul.f32.gmra.mxu0 %v412
        %v1218 = vpop.f32.mrf.mxu0
        %v1219 = vadd.f32 0.0, %v1218
        %1220 = vmatmul.f32.gmra.mxu0 %v415
        %v1221 = vpop.f32.mrf.mxu0
        %v1222 = vadd.f32 0.0, %v1221
        %1223 = vmatmul.f32.gmra.mxu0 %v418
        %v1224 = vpop.f32.mrf.mxu0
        %v1225 = vadd.f32 0.0, %v1224
        %1226 = vmatmul.f32.gmra.mxu0 %v421
        %v1227 = vpop.f32.mrf.mxu0
        %v1228 = vadd.f32 0.0, %v1227
        %1229 = vmatmul.f32.gmra.mxu0 %v424
        %v1230 = vpop.f32.mrf.mxu0
        %v1231 = vadd.f32 0.0, %v1230
        %1232 = vmatmul.f32.gmra.mxu0 %v427
        %v1233 = vpop.f32.mrf.mxu0
        %v1234 = vadd.f32 0.0, %v1233
        %1235 = vmatmul.f32.gmra.mxu0 %v430
        %v1236 = vpop.f32.mrf.mxu0
        %v1237 = vadd.f32 0.0, %v1236
        %1238 = vmatmul.f32.gmra.mxu0 %v433
        %v1239 = vpop.f32.mrf.mxu0
        %v1240 = vadd.f32 0.0, %v1239
        %1241 = vmatmul.f32.gmra.mxu0 %v436
        %v1242 = vpop.f32.mrf.mxu0
        %v1243 = vadd.f32 0.0, %v1242
        %1244 = vmatmul.f32.gmra.mxu0 %v439
        %v1245 = vpop.f32.mrf.mxu0
        %v1246 = vadd.f32 0.0, %v1245
        %1247 = vdwg.mxu0
        %s1248 = scalar_lea.vmem %s191, 1024 [#allocation5]
        %1249 = vst [vmem:[%s1248] sm:$0xff] %v1040
        %1250 = vst [vmem:[%s1248 + $0x8] sm:$0xff] %v1153
        %1251 = vst [vmem:[%s1248 + $0x10] sm:$0xff] %v1043
        %1252 = vst [vmem:[%s1248 + $0x18] sm:$0xff] %v1156
        %1253 = vst [vmem:[%s1248 + $0x20] sm:$0xff] %v1046
        %1254 = vst [vmem:[%s1248 + $0x28] sm:$0xff] %v1159
        %1255 = vst [vmem:[%s1248 + $0x30] sm:$0xff] %v1049
        %1256 = vst [vmem:[%s1248 + $0x38] sm:$0xff] %v1162
        %1257 = vst [vmem:[%s1248 + $0x40] sm:$0xff] %v1052
        %1258 = vst [vmem:[%s1248 + $0x48] sm:$0xff] %v1165
        %1259 = vst [vmem:[%s1248 + $0x50] sm:$0xff] %v1055
        %1260 = vst [vmem:[%s1248 + $0x58] sm:$0xff] %v1168
        %1261 = vst [vmem:[%s1248 + $0x60] sm:$0xff] %v1058
        %1262 = vst [vmem:[%s1248 + $0x68] sm:$0xff] %v1171
        %1263 = vst [vmem:[%s1248 + $0x70] sm:$0xff] %v1061
        %1264 = vst [vmem:[%s1248 + $0x78] sm:$0xff] %v1174
        %1265 = vst [vmem:[%s1248 + $0x80] sm:$0xff] %v1064
        %1266 = vst [vmem:[%s1248 + $0x88] sm:$0xff] %v1177
        %1267 = vst [vmem:[%s1248 + $0x90] sm:$0xff] %v1067
        %1268 = vst [vmem:[%s1248 + $0x98] sm:$0xff] %v1180
        %1269 = vst [vmem:[%s1248 + $0xa0] sm:$0xff] %v1070
        %1270 = vst [vmem:[%s1248 + $0xa8] sm:$0xff] %v1183
        %1271 = vst [vmem:[%s1248 + $0xb0] sm:$0xff] %v1073
        %1272 = vst [vmem:[%s1248 + $0xb8] sm:$0xff] %v1186
        %1273 = vst [vmem:[%s1248 + $0xc0] sm:$0xff] %v1076
        %1274 = vst [vmem:[%s1248 + $0xc8] sm:$0xff] %v1189
        %1275 = vst [vmem:[%s1248 + $0xd0] sm:$0xff] %v1079
        %1276 = vst [vmem:[%s1248 + $0xd8] sm:$0xff] %v1192
        %1277 = vst [vmem:[%s1248 + $0xe0] sm:$0xff] %v1082
        %1278 = vst [vmem:[%s1248 + $0xe8] sm:$0xff] %v1195
        %1279 = vst [vmem:[%s1248 + $0xf0] sm:$0xff] %v1085
        %1280 = vst [vmem:[%s1248 + $0xf8] sm:$0xff] %v1198
        %1281 = vst [vmem:[%s1248 + $0x100] sm:$0xff] %v1088
        %1282 = vst [vmem:[%s1248 + $0x108] sm:$0xff] %v1201
        %1283 = vst [vmem:[%s1248 + $0x110] sm:$0xff] %v1091
        %1284 = vst [vmem:[%s1248 + $0x118] sm:$0xff] %v1204
        %1285 = vst [vmem:[%s1248 + $0x120] sm:$0xff] %v1094
        %1286 = vst [vmem:[%s1248 + $0x128] sm:$0xff] %v1207
        %1287 = vst [vmem:[%s1248 + $0x130] sm:$0xff] %v1097
        %1288 = vst [vmem:[%s1248 + $0x138] sm:$0xff] %v1210
        %1289 = vst [vmem:[%s1248 + $0x140] sm:$0xff] %v1100
        %1290 = vst [vmem:[%s1248 + $0x148] sm:$0xff] %v1213
        %1291 = vst [vmem:[%s1248 + $0x150] sm:$0xff] %v1103
        %1292 = vst [vmem:[%s1248 + $0x158] sm:$0xff] %v1216
        %1293 = vst [vmem:[%s1248 + $0x160] sm:$0xff] %v1106
        %1294 = vst [vmem:[%s1248 + $0x168] sm:$0xff] %v1219
        %1295 = vst [vmem:[%s1248 + $0x170] sm:$0xff] %v1109
        %1296 = vst [vmem:[%s1248 + $0x178] sm:$0xff] %v1222
        %1297 = vst [vmem:[%s1248 + $0x180] sm:$0xff] %v1112
        %1298 = vst [vmem:[%s1248 + $0x188] sm:$0xff] %v1225
        %1299 = vst [vmem:[%s1248 + $0x190] sm:$0xff] %v1115
        %1300 = vst [vmem:[%s1248 + $0x198] sm:$0xff] %v1228
        %1301 = vst [vmem:[%s1248 + $0x1a0] sm:$0xff] %v1118
        %1302 = vst [vmem:[%s1248 + $0x1a8] sm:$0xff] %v1231
        %1303 = vst [vmem:[%s1248 + $0x1b0] sm:$0xff] %v1121
        %1304 = vst [vmem:[%s1248 + $0x1b8] sm:$0xff] %v1234
        %1305 = vst [vmem:[%s1248 + $0x1c0] sm:$0xff] %v1124
        %1306 = vst [vmem:[%s1248 + $0x1c8] sm:$0xff] %v1237
        %1307 = vst [vmem:[%s1248 + $0x1d0] sm:$0xff] %v1127
        %1308 = vst [vmem:[%s1248 + $0x1d8] sm:$0xff] %v1240
        %1309 = vst [vmem:[%s1248 + $0x1e0] sm:$0xff] %v1130
        %1310 = vst [vmem:[%s1248 + $0x1e8] sm:$0xff] %v1243
        %1311 = vst [vmem:[%s1248 + $0x1f0] sm:$0xff] %v1133
        %1312 = vst [vmem:[%s1248 + $0x1f8] sm:$0xff] %v1246
        %1313 = vmatpush.msra.mxu0 0.0
        %1314 = vmatpush.msra.mxu0 0.0
        %1315 = vmatpush.msra.mxu0 0.0
        %1316 = vmatpush.msra.mxu0 0.0
        %1317 = vmatpush.msra.mxu0 0.0
        %1318 = vmatpush.msra.mxu0 0.0
        %1319 = vmatpush.msra.mxu0 0.0
        %1320 = vmatpush.msra.mxu0 0.0
        %1321 = vmatpush.msra.mxu0 0.0
        %1322 = vmatpush.msra.mxu0 0.0
        %1323 = vmatpush.msra.mxu0 0.0
        %1324 = vmatpush.msra.mxu0 0.0
        %1325 = vmatpush.msra.mxu0 0.0
        %1326 = vmatpush.msra.mxu0 0.0
        %1327 = vmatpush.msra.mxu0 %v302
        %1328 = vmatpush.msra.mxu0 %v299
        %1329 = vmatmul.f32.gmra.mxu0 %v346
        %v1330 = vpop.f32.mrf.mxu0
        %v1331 = vadd.f32 0.0, %v1330
        %1332 = vmatmul.f32.gmra.mxu0 %v349
        %v1333 = vpop.f32.mrf.mxu0
        %v1334 = vadd.f32 0.0, %v1333
        %1335 = vmatmul.f32.gmra.mxu0 %v352
        %v1336 = vpop.f32.mrf.mxu0
        %v1337 = vadd.f32 0.0, %v1336
        %1338 = vmatmul.f32.gmra.mxu0 %v355
        %v1339 = vpop.f32.mrf.mxu0
        %v1340 = vadd.f32 0.0, %v1339
        %1341 = vmatmul.f32.gmra.mxu0 %v358
        %v1342 = vpop.f32.mrf.mxu0
        %v1343 = vadd.f32 0.0, %v1342
        %1344 = vmatmul.f32.gmra.mxu0 %v361
        %v1345 = vpop.f32.mrf.mxu0
        %v1346 = vadd.f32 0.0, %v1345
        %1347 = vmatmul.f32.gmra.mxu0 %v364
        %v1348 = vpop.f32.mrf.mxu0
        %v1349 = vadd.f32 0.0, %v1348
        %1350 = vmatmul.f32.gmra.mxu0 %v367
        %v1351 = vpop.f32.mrf.mxu0
        %v1352 = vadd.f32 0.0, %v1351
        %1353 = vmatmul.f32.gmra.mxu0 %v370
        %v1354 = vpop.f32.mrf.mxu0
        %v1355 = vadd.f32 0.0, %v1354
        %1356 = vmatmul.f32.gmra.mxu0 %v373
        %v1357 = vpop.f32.mrf.mxu0
        %v1358 = vadd.f32 0.0, %v1357
        %1359 = vmatmul.f32.gmra.mxu0 %v376
        %v1360 = vpop.f32.mrf.mxu0
        %v1361 = vadd.f32 0.0, %v1360
        %1362 = vmatmul.f32.gmra.mxu0 %v379
        %v1363 = vpop.f32.mrf.mxu0
        %v1364 = vadd.f32 0.0, %v1363
        %1365 = vmatmul.f32.gmra.mxu0 %v382
        %v1366 = vpop.f32.mrf.mxu0
        %v1367 = vadd.f32 0.0, %v1366
        %1368 = vmatmul.f32.gmra.mxu0 %v385
        %v1369 = vpop.f32.mrf.mxu0
        %v1370 = vadd.f32 0.0, %v1369
        %1371 = vmatmul.f32.gmra.mxu0 %v388
        %v1372 = vpop.f32.mrf.mxu0
        %v1373 = vadd.f32 0.0, %v1372
        %1374 = vmatmul.f32.gmra.mxu0 %v391
        %v1375 = vpop.f32.mrf.mxu0
        %v1376 = vadd.f32 0.0, %v1375
        %1377 = vmatmul.f32.gmra.mxu0 %v394
        %v1378 = vpop.f32.mrf.mxu0
        %v1379 = vadd.f32 0.0, %v1378
        %1380 = vmatmul.f32.gmra.mxu0 %v397
        %v1381 = vpop.f32.mrf.mxu0
        %v1382 = vadd.f32 0.0, %v1381
        %1383 = vmatmul.f32.gmra.mxu0 %v400
        %v1384 = vpop.f32.mrf.mxu0
        %v1385 = vadd.f32 0.0, %v1384
        %1386 = vmatmul.f32.gmra.mxu0 %v403
        %v1387 = vpop.f32.mrf.mxu0
        %v1388 = vadd.f32 0.0, %v1387
        %1389 = vmatmul.f32.gmra.mxu0 %v406
        %v1390 = vpop.f32.mrf.mxu0
        %v1391 = vadd.f32 0.0, %v1390
        %1392 = vmatmul.f32.gmra.mxu0 %v409
        %v1393 = vpop.f32.mrf.mxu0
        %v1394 = vadd.f32 0.0, %v1393
        %1395 = vmatmul.f32.gmra.mxu0 %v412
        %v1396 = vpop.f32.mrf.mxu0
        %v1397 = vadd.f32 0.0, %v1396
        %1398 = vmatmul.f32.gmra.mxu0 %v415
        %v1399 = vpop.f32.mrf.mxu0
        %v1400 = vadd.f32 0.0, %v1399
        %1401 = vmatmul.f32.gmra.mxu0 %v418
        %v1402 = vpop.f32.mrf.mxu0
        %v1403 = vadd.f32 0.0, %v1402
        %1404 = vmatmul.f32.gmra.mxu0 %v421
        %v1405 = vpop.f32.mrf.mxu0
        %v1406 = vadd.f32 0.0, %v1405
        %1407 = vmatmul.f32.gmra.mxu0 %v424
        %v1408 = vpop.f32.mrf.mxu0
        %v1409 = vadd.f32 0.0, %v1408
        %1410 = vmatmul.f32.gmra.mxu0 %v427
        %v1411 = vpop.f32.mrf.mxu0
        %v1412 = vadd.f32 0.0, %v1411
        %1413 = vmatmul.f32.gmra.mxu0 %v430
        %v1414 = vpop.f32.mrf.mxu0
        %v1415 = vadd.f32 0.0, %v1414
        %1416 = vmatmul.f32.gmra.mxu0 %v433
        %v1417 = vpop.f32.mrf.mxu0
        %v1418 = vadd.f32 0.0, %v1417
        %1419 = vmatmul.f32.gmra.mxu0 %v436
        %v1420 = vpop.f32.mrf.mxu0
        %v1421 = vadd.f32 0.0, %v1420
        %1422 = vmatmul.f32.gmra.mxu0 %v439
        %v1423 = vpop.f32.mrf.mxu0
        %v1424 = vadd.f32 0.0, %v1423
        %1425 = vdwg.mxu0
        %1426 = vmatpush.msra.mxu0 0.0
        %1427 = vmatpush.msra.mxu0 0.0
        %1428 = vmatpush.msra.mxu0 0.0
        %1429 = vmatpush.msra.mxu0 0.0
        %1430 = vmatpush.msra.mxu0 0.0
        %1431 = vmatpush.msra.mxu0 0.0
        %1432 = vmatpush.msra.mxu0 0.0
        %1433 = vmatpush.msra.mxu0 0.0
        %1434 = vmatpush.msra.mxu0 0.0
        %1435 = vmatpush.msra.mxu0 0.0
        %1436 = vmatpush.msra.mxu0 0.0
        %1437 = vmatpush.msra.mxu0 0.0
        %1438 = vmatpush.msra.mxu0 0.0
        %1439 = vmatpush.msra.mxu0 0.0
        %1440 = vmatpush.msra.mxu0 %v343
        %1441 = vmatpush.msra.mxu0 %v340
        %1442 = vmatmul.f32.gmra.mxu0 %v346
        %v1443 = vpop.f32.mrf.mxu0
        %v1444 = vadd.f32 0.0, %v1443
        %1445 = vmatmul.f32.gmra.mxu0 %v349
        %v1446 = vpop.f32.mrf.mxu0
        %v1447 = vadd.f32 0.0, %v1446
        %1448 = vmatmul.f32.gmra.mxu0 %v352
        %v1449 = vpop.f32.mrf.mxu0
        %v1450 = vadd.f32 0.0, %v1449
        %1451 = vmatmul.f32.gmra.mxu0 %v355
        %v1452 = vpop.f32.mrf.mxu0
        %v1453 = vadd.f32 0.0, %v1452
        %1454 = vmatmul.f32.gmra.mxu0 %v358
        %v1455 = vpop.f32.mrf.mxu0
        %v1456 = vadd.f32 0.0, %v1455
        %1457 = vmatmul.f32.gmra.mxu0 %v361
        %v1458 = vpop.f32.mrf.mxu0
        %v1459 = vadd.f32 0.0, %v1458
        %1460 = vmatmul.f32.gmra.mxu0 %v364
        %v1461 = vpop.f32.mrf.mxu0
        %v1462 = vadd.f32 0.0, %v1461
        %1463 = vmatmul.f32.gmra.mxu0 %v367
        %v1464 = vpop.f32.mrf.mxu0
        %v1465 = vadd.f32 0.0, %v1464
        %1466 = vmatmul.f32.gmra.mxu0 %v370
        %v1467 = vpop.f32.mrf.mxu0
        %v1468 = vadd.f32 0.0, %v1467
        %1469 = vmatmul.f32.gmra.mxu0 %v373
        %v1470 = vpop.f32.mrf.mxu0
        %v1471 = vadd.f32 0.0, %v1470
        %1472 = vmatmul.f32.gmra.mxu0 %v376
        %v1473 = vpop.f32.mrf.mxu0
        %v1474 = vadd.f32 0.0, %v1473
        %1475 = vmatmul.f32.gmra.mxu0 %v379
        %v1476 = vpop.f32.mrf.mxu0
        %v1477 = vadd.f32 0.0, %v1476
        %1478 = vmatmul.f32.gmra.mxu0 %v382
        %v1479 = vpop.f32.mrf.mxu0
        %v1480 = vadd.f32 0.0, %v1479
        %1481 = vmatmul.f32.gmra.mxu0 %v385
        %v1482 = vpop.f32.mrf.mxu0
        %v1483 = vadd.f32 0.0, %v1482
        %1484 = vmatmul.f32.gmra.mxu0 %v388
        %v1485 = vpop.f32.mrf.mxu0
        %v1486 = vadd.f32 0.0, %v1485
        %1487 = vmatmul.f32.gmra.mxu0 %v391
        %v1488 = vpop.f32.mrf.mxu0
        %v1489 = vadd.f32 0.0, %v1488
        %1490 = vmatmul.f32.gmra.mxu0 %v394
        %v1491 = vpop.f32.mrf.mxu0
        %v1492 = vadd.f32 0.0, %v1491
        %1493 = vmatmul.f32.gmra.mxu0 %v397
        %v1494 = vpop.f32.mrf.mxu0
        %v1495 = vadd.f32 0.0, %v1494
        %1496 = vmatmul.f32.gmra.mxu0 %v400
        %v1497 = vpop.f32.mrf.mxu0
        %v1498 = vadd.f32 0.0, %v1497
        %1499 = vmatmul.f32.gmra.mxu0 %v403
        %v1500 = vpop.f32.mrf.mxu0
        %v1501 = vadd.f32 0.0, %v1500
        %1502 = vmatmul.f32.gmra.mxu0 %v406
        %v1503 = vpop.f32.mrf.mxu0
        %v1504 = vadd.f32 0.0, %v1503
        %1505 = vmatmul.f32.gmra.mxu0 %v409
        %v1506 = vpop.f32.mrf.mxu0
        %v1507 = vadd.f32 0.0, %v1506
        %1508 = vmatmul.f32.gmra.mxu0 %v412
        %v1509 = vpop.f32.mrf.mxu0
        %v1510 = vadd.f32 0.0, %v1509
        %1511 = vmatmul.f32.gmra.mxu0 %v415
        %v1512 = vpop.f32.mrf.mxu0
        %v1513 = vadd.f32 0.0, %v1512
        %1514 = vmatmul.f32.gmra.mxu0 %v418
        %v1515 = vpop.f32.mrf.mxu0
        %v1516 = vadd.f32 0.0, %v1515
        %1517 = vmatmul.f32.gmra.mxu0 %v421
        %v1518 = vpop.f32.mrf.mxu0
        %v1519 = vadd.f32 0.0, %v1518
        %1520 = vmatmul.f32.gmra.mxu0 %v424
        %v1521 = vpop.f32.mrf.mxu0
        %v1522 = vadd.f32 0.0, %v1521
        %1523 = vmatmul.f32.gmra.mxu0 %v427
        %v1524 = vpop.f32.mrf.mxu0
        %v1525 = vadd.f32 0.0, %v1524
        %1526 = vmatmul.f32.gmra.mxu0 %v430
        %v1527 = vpop.f32.mrf.mxu0
        %v1528 = vadd.f32 0.0, %v1527
        %1529 = vmatmul.f32.gmra.mxu0 %v433
        %v1530 = vpop.f32.mrf.mxu0
        %v1531 = vadd.f32 0.0, %v1530
        %1532 = vmatmul.f32.gmra.mxu0 %v436
        %v1533 = vpop.f32.mrf.mxu0
        %v1534 = vadd.f32 0.0, %v1533
        %1535 = vmatmul.f32.gmra.mxu0 %v439
        %v1536 = vpop.f32.mrf.mxu0
        %v1537 = vadd.f32 0.0, %v1536
        %1538 = vdwg.mxu0
        %s1539 = scalar_lea.vmem %s191, 1536 [#allocation5]
        %1540 = vst [vmem:[%s1539] sm:$0xff] %v1331
        %1541 = vst [vmem:[%s1539 + $0x8] sm:$0xff] %v1444
        %1542 = vst [vmem:[%s1539 + $0x10] sm:$0xff] %v1334
        %1543 = vst [vmem:[%s1539 + $0x18] sm:$0xff] %v1447
        %1544 = vst [vmem:[%s1539 + $0x20] sm:$0xff] %v1337
        %1545 = vst [vmem:[%s1539 + $0x28] sm:$0xff] %v1450
        %1546 = vst [vmem:[%s1539 + $0x30] sm:$0xff] %v1340
        %1547 = vst [vmem:[%s1539 + $0x38] sm:$0xff] %v1453
        %1548 = vst [vmem:[%s1539 + $0x40] sm:$0xff] %v1343
        %1549 = vst [vmem:[%s1539 + $0x48] sm:$0xff] %v1456
        %1550 = vst [vmem:[%s1539 + $0x50] sm:$0xff] %v1346
        %1551 = vst [vmem:[%s1539 + $0x58] sm:$0xff] %v1459
        %1552 = vst [vmem:[%s1539 + $0x60] sm:$0xff] %v1349
        %1553 = vst [vmem:[%s1539 + $0x68] sm:$0xff] %v1462
        %1554 = vst [vmem:[%s1539 + $0x70] sm:$0xff] %v1352
        %1555 = vst [vmem:[%s1539 + $0x78] sm:$0xff] %v1465
        %1556 = vst [vmem:[%s1539 + $0x80] sm:$0xff] %v1355
        %1557 = vst [vmem:[%s1539 + $0x88] sm:$0xff] %v1468
        %1558 = vst [vmem:[%s1539 + $0x90] sm:$0xff] %v1358
        %1559 = vst [vmem:[%s1539 + $0x98] sm:$0xff] %v1471
        %1560 = vst [vmem:[%s1539 + $0xa0] sm:$0xff] %v1361
        %1561 = vst [vmem:[%s1539 + $0xa8] sm:$0xff] %v1474
        %1562 = vst [vmem:[%s1539 + $0xb0] sm:$0xff] %v1364
        %1563 = vst [vmem:[%s1539 + $0xb8] sm:$0xff] %v1477
        %1564 = vst [vmem:[%s1539 + $0xc0] sm:$0xff] %v1367
        %1565 = vst [vmem:[%s1539 + $0xc8] sm:$0xff] %v1480
        %1566 = vst [vmem:[%s1539 + $0xd0] sm:$0xff] %v1370
        %1567 = vst [vmem:[%s1539 + $0xd8] sm:$0xff] %v1483
        %1568 = vst [vmem:[%s1539 + $0xe0] sm:$0xff] %v1373
        %1569 = vst [vmem:[%s1539 + $0xe8] sm:$0xff] %v1486
        %1570 = vst [vmem:[%s1539 + $0xf0] sm:$0xff] %v1376
        %1571 = vst [vmem:[%s1539 + $0xf8] sm:$0xff] %v1489
        %1572 = vst [vmem:[%s1539 + $0x100] sm:$0xff] %v1379
        %1573 = vst [vmem:[%s1539 + $0x108] sm:$0xff] %v1492
        %1574 = vst [vmem:[%s1539 + $0x110] sm:$0xff] %v1382
        %1575 = vst [vmem:[%s1539 + $0x118] sm:$0xff] %v1495
        %1576 = vst [vmem:[%s1539 + $0x120] sm:$0xff] %v1385
        %1577 = vst [vmem:[%s1539 + $0x128] sm:$0xff] %v1498
        %1578 = vst [vmem:[%s1539 + $0x130] sm:$0xff] %v1388
        %1579 = vst [vmem:[%s1539 + $0x138] sm:$0xff] %v1501
        %1580 = vst [vmem:[%s1539 + $0x140] sm:$0xff] %v1391
        %1581 = vst [vmem:[%s1539 + $0x148] sm:$0xff] %v1504
        %1582 = vst [vmem:[%s1539 + $0x150] sm:$0xff] %v1394
        %1583 = vst [vmem:[%s1539 + $0x158] sm:$0xff] %v1507
        %1584 = vst [vmem:[%s1539 + $0x160] sm:$0xff] %v1397
        %1585 = vst [vmem:[%s1539 + $0x168] sm:$0xff] %v1510
        %1586 = vst [vmem:[%s1539 + $0x170] sm:$0xff] %v1400
        %1587 = vst [vmem:[%s1539 + $0x178] sm:$0xff] %v1513
        %1588 = vst [vmem:[%s1539 + $0x180] sm:$0xff] %v1403
        %1589 = vst [vmem:[%s1539 + $0x188] sm:$0xff] %v1516
        %1590 = vst [vmem:[%s1539 + $0x190] sm:$0xff] %v1406
        %1591 = vst [vmem:[%s1539 + $0x198] sm:$0xff] %v1519
        %1592 = vst [vmem:[%s1539 + $0x1a0] sm:$0xff] %v1409
        %1593 = vst [vmem:[%s1539 + $0x1a8] sm:$0xff] %v1522
        %1594 = vst [vmem:[%s1539 + $0x1b0] sm:$0xff] %v1412
        %1595 = vst [vmem:[%s1539 + $0x1b8] sm:$0xff] %v1525
        %1596 = vst [vmem:[%s1539 + $0x1c0] sm:$0xff] %v1415
        %1597 = vst [vmem:[%s1539 + $0x1c8] sm:$0xff] %v1528
        %1598 = vst [vmem:[%s1539 + $0x1d0] sm:$0xff] %v1418
        %1599 = vst [vmem:[%s1539 + $0x1d8] sm:$0xff] %v1531
        %1600 = vst [vmem:[%s1539 + $0x1e0] sm:$0xff] %v1421
        %1601 = vst [vmem:[%s1539 + $0x1e8] sm:$0xff] %v1534
        %1602 = vst [vmem:[%s1539 + $0x1f0] sm:$0xff] %v1424
        %1603 = vst [vmem:[%s1539 + $0x1f8] sm:$0xff] %v1537
        %s1604 = sand.u32 %s96, 1
        %s1605 = scalar_lea.sflag [#allocation4], %s1604
        %s1606 = sand.u32 %s96, 1
        %s1607 = smul.addr %s1606, 2048
        %s1608 = scalar_lea.vmem [#allocation5], %s1607
        // Predicated region
        $region37: #{stylization_forward.1} parent=31 // pred_check
          %p1609 = pneg %p106
        $region38: #{stylization_forward.1} parent=31 // pred_check_branch
          %1611 = sbr.rel (%p1609) target = $region40
        $region39: #{stylization_forward.1} parent=31 // pred_region
          %s1612 = smul.u32 4, %s20
          %1614 = vsyncadd %s1605, 0
          %s1615 = smul.addr %s1612, 64
          %s1616 = smul.addr %s1615, 8
          %s1617 = scalar_lea.hbm %s3, %s1616
          %s1618 = sshll.u32 %s1608, 4
          %s1619 = int_to_ptr.vmem [resolvable:$true] %s1618
          %s1620 = sshll.u32 %s1617, 4
          %s1621 = int_to_ptr.hbm [resolvable:$true] %s1620
          %1626 = dma.vmem_to_hbm [thread:$0]  %s1619, 32768, %s1621, %s1605, 256, 256, 16
        $region40: #{stylization_forward.1} parent=31 // pred_fallthru
          _
      $region32: #{stylization_forward.1} parent=5 // pred_fallthru
        _
      %p1627 = scmp.le.s32.totalorder 2, %s15
      // Predicated region
      $region41: #{stylization_forward.1} parent=5 // pred_check
        %p1628 = pneg %p1627
      $region42: #{stylization_forward.1} parent=5 // pred_check_branch
        %1630 = sbr.rel (%p1628) target = $region44
      $region43: #{stylization_forward.1} parent=5 // pred_region
        %s1631 = ssub.s32 %s15, 2
        // Predicated region
        $region45: #{stylization_forward.1} parent=43 // pred_check
          %p1632 = pneg %p112
        $region46: #{stylization_forward.1} parent=43 // pred_check_branch
          %1634 = sbr.rel (%p1632) target = $region48
        $region47: #{stylization_forward.1} parent=43 // pred_region
          %s1635 = sand.u32 %s97, 1
          %s1636 = scalar_lea.sflag [#allocation4], %s1635
          %s1637 = sand.u32 %s97, 1
          %s1638 = smul.addr %s1637, 2048
          %s1639 = scalar_lea.vmem [#allocation5], %s1638
          %1641 = dma.done %s1636, 32768
        $region48: #{stylization_forward.1} parent=43 // pred_fallthru
          _
      $region44: #{stylization_forward.1} parent=5 // pred_fallthru
        _
    $region6: #{stylization_forward.1} parent=1 // loop_footer
      %s19 = sadd.s32 1, %s15
    $region7: #{stylization_forward.1} parent=1 // loop_footer_branch
      %14 = sbr.rel target = $region3
    $region8: #{stylization_forward.1} parent=1 // loop_exit
      _
    %1642 = vsyncpa [#allocation3], 1
    %s1643 = scalar_lea.sflag [#allocation3], 1
    %1644 = vsyncpa %s1643, 1
    %1645 = vsyncpa [#allocation4], 1
    %s1646 = scalar_lea.sflag [#allocation4], 1
    %1647 = vsyncpa %s1646, 1

</llo_original>
